<compile_context>
chip_gen: v7x
topology: tpu7x:2x2x1
jax: 0.10.0
libtpu: 0.0.40
codegen_flags: <defaults>
</compile_context>

<pallas_src>
import functools

import jax
import jax.numpy as jnp
from jax import lax
from jax.experimental import pallas as pl
from jax.experimental.pallas import tpu as pltpu


DROP_P = 0.2                                  # torch.nn.Dropout(0.2)
DROP_THRESHOLD = int(round(DROP_P * (1 << 24)))   # keep iff hash24 >= threshold
LEAKY_SLOPE = 0.1                             # torch.nn.LeakyReLU(0.1)
BN_EPS = 1e-5                                 # torch.nn.BatchNorm2d default eps
_HASH_MUL = 0x45D9F3B                         # fits in int32


def conv_act_stats_kernel(seed_ref, patches_ref, w_ref, act_ref, stats_ref):
    """Pass 1: conv (im2col matmul) + LeakyReLU + dropout; emit act tile + BN partials."""
    # ---- Conv2d(bias=False): bf16 operands on the MXU, f32 accumulation ---------
    x = jnp.dot(patches_ref[...], w_ref[...],
                preferred_element_type=jnp.float32)            # [TM, C_pad] f32

    # ---- LeakyReLU(0.1) ----------------------------------------------------------
    x = jnp.where(x >= 0.0, x, LEAKY_SLOPE * x)

    # ---- Dropout(0.2), train mode ------------------------------------------------
    # Counter-based integer hash keyed on (seed, global row, channel): unique mask
    # per element and per grid tile; raw threshold compare, no float conversion.
    # The 1/(1-p) rescale is intentionally omitted: the following train-mode
    # BatchNorm is invariant to a per-channel constant scale.
    tm, cp = x.shape
    row = lax.broadcasted_iota(jnp.int32, (tm, cp), 0) + pl.program_id(0) * tm
    col = lax.broadcasted_iota(jnp.int32, (tm, cp), 1)
    h = row * jnp.int32(65599) + col
    h = h ^ (seed_ref[0] * jnp.int32(_HASH_MUL) + jnp.int32(0x12FAD5))
    h = h ^ (h >> 16)
    h = h * jnp.int32(_HASH_MUL)
    h = h ^ (h >> 13)
    h = h * jnp.int32(_HASH_MUL)
    h = h ^ (h >> 16)
    keep = (h & jnp.int32(0x00FFFFFF)) >= jnp.int32(DROP_THRESHOLD)
    x = jnp.where(keep, x, 0.0)

    act_ref[...] = x

    # ---- Per-tile BN partials: row 0 = sum, row 1 = sum of squares ---------------
    s = jnp.sum(x, axis=0, keepdims=True)                      # [1, C_pad]
    ss = jnp.sum(x * x, axis=0, keepdims=True)                 # [1, C_pad]
    rows8 = lax.broadcasted_iota(jnp.int32, (8, cp), 0)
    stats_ref[...] = jnp.where(rows8 == 0, s, jnp.where(rows8 == 1, ss, 0.0))


def bn_apply_kernel(act_ref, scale_ref, shift_ref, out_ref):
    """Pass 2: apply folded BatchNorm: y = act * scale + shift (lane-dense store)."""
    out_ref[...] = act_ref[...] * scale_ref[...] + shift_ref[...]


def _im2col_nhwc(x_nhwc, kh, kw, stride, padding):
    """[N,H,W,C] -> patch matrix [N*Ho*Wo, kh*kw*C] with (ki, kj, c) fast-axis order."""
    n, h, w, c = x_nhwc.shape
    xp = jnp.pad(x_nhwc, ((0, 0), (padding, padding), (padding, padding), (0, 0)))
    ho = (h + 2 * padding - kh) // stride + 1
    wo = (w + 2 * padding - kw) // stride + 1
    cols = []
    for i in range(kh):
        for j in range(kw):
            cols.append(xp[:, i:i + stride * ho:stride, j:j + stride * wo:stride, :])
    patches = jnp.stack(cols, axis=3)                           # [N, Ho, Wo, kh*kw, C]
    patches = patches.reshape(n * ho * wo, kh * kw * c)
    return patches, ho, wo


@functools.partial(jax.jit, static_argnames=("stride", "padding", "tm"))
def encoder_block_forward(x_nchw, weight, gamma, beta, seed, *, stride, padding, tm=256):
    """x_nchw: [N, C_in, H, W]; weight: [C_out, C_in, KH, KW] (PyTorch layout)."""
    n, c_in, h, w = x_nchw.shape
    c_out, _, kh, kw = weight.shape
    k = kh * kw * c_in
    c_pad = max(128, ((c_out + 127) // 128) * 128)              # lane-dense channel dim

    # Wrapper-side layout + im2col (bf16 halves the HBM bytes of the big operand).
    x_nhwc = jnp.transpose(x_nchw, (0, 2, 3, 1)).astype(jnp.bfloat16)
    patches, ho, wo = _im2col_nhwc(x_nhwc, kh, kw, stride, padding)   # [M, K] bf16
    m = n * ho * wo
    m_pad = ((m + tm - 1) // tm) * tm
    if m_pad != m:
        # Zero rows contribute exactly 0 to the BN sums, so padding M is harmless.
        patches = jnp.pad(patches, ((0, m_pad - m), (0, 0)))
    num_tiles = m_pad // tm

    # weight [C_out, C_in, KH, KW] -> [K, C_pad] (zero-padded channels), bf16.
    w_mat = jnp.transpose(weight, (2, 3, 1, 0)).reshape(k, c_out).astype(jnp.bfloat16)
    w_mat = jnp.pad(w_mat, ((0, 0), (0, c_pad - c_out)))

    seed_arr = jnp.reshape(jnp.asarray(seed, dtype=jnp.int32), (1,))

    cparams = pltpu.CompilerParams(
        dimension_semantics=("parallel",),          # shards tiles across TCs on v7x
        vmem_limit_bytes=32 * 1024 * 1024,          # safe on v5e / v6e / v7x
    )

    # ---- Pass 1: conv + LeakyReLU + dropout, activation + per-tile BN partials ---
    act, stats = pl.pallas_call(
        conv_act_stats_kernel,
        out_shape=(
            jax.ShapeDtypeStruct((m_pad, c_pad), jnp.float32),       # activation
            jax.ShapeDtypeStruct((num_tiles * 8, c_pad), jnp.float32),  # BN partials
        ),
        grid=(num_tiles,),
        in_specs=[
            pl.BlockSpec(memory_space=pltpu.MemorySpace.SMEM),       # seed scalar
            pl.BlockSpec((tm, k), lambda i: (i, 0)),                 # patch rows
            pl.BlockSpec((k, c_pad), lambda i: (0, 0)),              # conv weight
        ],
        out_specs=(
            pl.BlockSpec((tm, c_pad), lambda i: (i, 0)),
            pl.BlockSpec((8, c_pad), lambda i: (i, 0)),
        ),
        compiler_params=cparams,
    )(seed_arr, patches, w_mat)

    # ---- Combine tiny per-tile partials -> folded BN scale/shift (train mode) ----
    stats = stats.reshape(num_tiles, 8, c_pad)
    total_sum = jnp.sum(stats[:, 0, :], axis=0)                  # [C_pad]
    total_sq = jnp.sum(stats[:, 1, :], axis=0)                   # [C_pad]
    mean = total_sum / m                                         # divide by true M
    var = jnp.maximum(total_sq / m - mean * mean, 0.0)           # biased variance
    gamma_p = jnp.pad(gamma.astype(jnp.float32), (0, c_pad - c_out))
    beta_p = jnp.pad(beta.astype(jnp.float32), (0, c_pad - c_out))
    scale = gamma_p * lax.rsqrt(var + BN_EPS)
    shift = beta_p - mean * scale

    # ---- Pass 2: normalize (lane-dense output) -----------------------------------
    y = pl.pallas_call(
        bn_apply_kernel,
        out_shape=jax.ShapeDtypeStruct((m_pad, c_pad), jnp.float32),
        grid=(num_tiles,),
        in_specs=[
            pl.BlockSpec((tm, c_pad), lambda i: (i, 0)),
            pl.BlockSpec((1, c_pad), lambda i: (0, 0)),
            pl.BlockSpec((1, c_pad), lambda i: (0, 0)),
        ],
        out_specs=pl.BlockSpec((tm, c_pad), lambda i: (i, 0)),
        compiler_params=cparams,
    )(act, scale.reshape(1, c_pad), shift.reshape(1, c_pad))

    # [M_pad, C_pad] -> [N, Ho, Wo, C_out] -> NCHW
    out = y[:m, :c_out].reshape(n, ho, wo, c_out).transpose(0, 3, 1, 2)
    return out


if __name__ == "__main__":
    # EncoderBlock(filter_in=4, filter_out=8, kernel=3, stride=1, padding=1)
    N, C_IN, H, W = 2, 4, 16, 16
    C_OUT, KH, KW = 8, 3, 3
    STRIDE, PADDING = 1, 1

    key = jax.random.PRNGKey(0)
    kx, kw_ = jax.random.split(key)

    x = jax.random.normal(kx, (N, C_IN, H, W), dtype=jnp.float32)
    # Deterministic conv weight (Kaiming-ish scale); BN affine defaults: gamma=1, beta=0.
    fan_in = C_IN * KH * KW
    weight = jax.random.normal(kw_, (C_OUT, C_IN, KH, KW), dtype=jnp.float32) * (fan_in ** -0.5)
    gamma = jnp.ones((C_OUT,), dtype=jnp.float32)
    beta = jnp.zeros((C_OUT,), dtype=jnp.float32)

    out = encoder_block_forward(x, weight, gamma, beta, seed=0,
                                stride=STRIDE, padding=PADDING)
    out = jax.block_until_ready(out)
    assert out.shape == (N, C_OUT, H, W), out.shape
    assert bool(jnp.all(jnp.isfinite(out))), "non-finite output"
    print("KERNEL_OK")
</pallas_src>

<mosaic_0001>
module attributes {stable_mosaic.version = 11 : i64} {
  func.func @conv_act_stats_kernel(%arg0: i32, %arg1: memref<1xi32, #tpu.memory_space<smem>>, %arg2: memref<256x36xbf16, #tpu.memory_space<vmem>>, %arg3: memref<36x128xbf16, #tpu.memory_space<vmem>>, %arg4: memref<256x128xf32, #tpu.memory_space<vmem>>, %arg5: memref<8x128xf32, #tpu.memory_space<vmem>>) attributes {dimension_semantics = [#tpu.dimension_semantics<parallel>], iteration_bounds = array<i64: 2>, scalar_prefetch = 0 : i64, scratch_operands = 0 : i64, tpu.core_type = #tpu.core_type<tc>, window_params = [{transform_indices = @transform_0, window_bounds = array<i64: 1>}, {transform_indices = @transform_1, window_bounds = array<i64: 256, 36>}, {pipeline_mode = #tpu.pipeline_mode<synchronous>, transform_indices = @transform_2, window_bounds = array<i64: 36, 128>}, {transform_indices = @transform_3, window_bounds = array<i64: 256, 128>}, {transform_indices = @transform_4, window_bounds = array<i64: 8, 128>}]} {
    %c0 = arith.constant 0 : index
    %c0_0 = arith.constant 0 : index
    %0 = vector.load %arg2[%c0, %c0_0] : memref<256x36xbf16, #tpu.memory_space<vmem>>, vector<256x36xbf16>
    %c0_1 = arith.constant 0 : index
    %c0_2 = arith.constant 0 : index
    %1 = vector.load %arg3[%c0_1, %c0_2] : memref<36x128xbf16, #tpu.memory_space<vmem>>, vector<36x128xbf16>
    %cst = arith.constant dense<0.000000e+00> : vector<256x128xf32>
    %2 = tpu.matmul %0, %1, %cst {dimension_numbers = #tpu.dot_dimension_numbers<[1], [0], [0], [1], [0, 0, 1, 1], [], []>} : vector<256x36xbf16>, vector<36x128xbf16>, vector<256x128xf32> -> vector<256x128xf32>
    %cst_3 = arith.constant 0.000000e+00 : f32
    %3 = vector.broadcast %cst_3 : f32 to vector<256x128xf32>
    %4 = arith.cmpf oge, %2, %3 : vector<256x128xf32>
    %cst_4 = arith.constant 1.000000e-01 : f32
    %5 = vector.broadcast %cst_4 : f32 to vector<256x128xf32>
    %6 = arith.mulf %5, %2 : vector<256x128xf32>
    %7 = arith.select %4, %2, %6 : vector<256x128xi1>, vector<256x128xf32>
    %8 = tpu.iota {dimensions = array<i32: 0>} : vector<256x128xi32>
    %c256_i32 = arith.constant 256 : i32
    %9 = arith.muli %arg0, %c256_i32 : i32
    %10 = vector.broadcast %9 : i32 to vector<256x128xi32>
    %11 = arith.addi %8, %10 : vector<256x128xi32>
    %12 = tpu.iota {dimensions = array<i32: 1>} : vector<256x128xi32>
    %c65599_i32 = arith.constant 65599 : i32
    %13 = vector.broadcast %c65599_i32 : i32 to vector<256x128xi32>
    %14 = arith.muli %11, %13 : vector<256x128xi32>
    %15 = arith.addi %14, %12 : vector<256x128xi32>
    %c0_5 = arith.constant 0 : index
    %16 = memref.load %arg1[%c0_5] : memref<1xi32, #tpu.memory_space<smem>>
    %c73244475_i32 = arith.constant 73244475 : i32
    %17 = arith.muli %16, %c73244475_i32 : i32
    %c1243861_i32 = arith.constant 1243861 : i32
    %18 = arith.addi %17, %c1243861_i32 : i32
    %19 = vector.broadcast %18 : i32 to vector<256x128xi32>
    %20 = arith.xori %15, %19 : vector<256x128xi32>
    %c16_i32 = arith.constant 16 : i32
    %21 = vector.broadcast %c16_i32 : i32 to vector<256x128xi32>
    %22 = arith.shrsi %20, %21 : vector<256x128xi32>
    %23 = arith.xori %20, %22 : vector<256x128xi32>
    %c73244475_i32_6 = arith.constant 73244475 : i32
    %24 = vector.broadcast %c73244475_i32_6 : i32 to vector<256x128xi32>
    %25 = arith.muli %23, %24 : vector<256x128xi32>
    %c13_i32 = arith.constant 13 : i32
    %26 = vector.broadcast %c13_i32 : i32 to vector<256x128xi32>
    %27 = arith.shrsi %25, %26 : vector<256x128xi32>
    %28 = arith.xori %25, %27 : vector<256x128xi32>
    %c73244475_i32_7 = arith.constant 73244475 : i32
    %29 = vector.broadcast %c73244475_i32_7 : i32 to vector<256x128xi32>
    %30 = arith.muli %28, %29 : vector<256x128xi32>
    %c16_i32_8 = arith.constant 16 : i32
    %31 = vector.broadcast %c16_i32_8 : i32 to vector<256x128xi32>
    %32 = arith.shrsi %30, %31 : vector<256x128xi32>
    %33 = arith.xori %30, %32 : vector<256x128xi32>
    %c16777215_i32 = arith.constant 16777215 : i32
    %34 = vector.broadcast %c16777215_i32 : i32 to vector<256x128xi32>
    %35 = arith.andi %33, %34 : vector<256x128xi32>
    %c3355443_i32 = arith.constant 3355443 : i32
    %36 = vector.broadcast %c3355443_i32 : i32 to vector<256x128xi32>
    %37 = arith.cmpi sge, %35, %36 : vector<256x128xi32>
    %cst_9 = arith.constant 0.000000e+00 : f32
    %38 = vector.broadcast %cst_9 : f32 to vector<256x128xf32>
    %39 = arith.select %37, %7, %38 : vector<256x128xi1>, vector<256x128xf32>
    %c0_10 = arith.constant 0 : index
    %c0_11 = arith.constant 0 : index
    %40 = vector.load %arg4[%c0_10, %c0_11] : memref<256x128xf32, #tpu.memory_space<vmem>>, vector<256x128xf32>
    tpu.vector_store %arg4[%c0_10, %c0_11], %39 {strides = array<i32>} : memref<256x128xf32, #tpu.memory_space<vmem>>, vector<256x128xf32>,
    %cst_12 = arith.constant dense<0.000000e+00> : vector<128xf32>
    %41 = vector.multi_reduction <add>, %39, %cst_12 [0] : vector<256x128xf32> to vector<128xf32>
    %42 = vector.shape_cast %41 : vector<128xf32> to vector<1x128xf32>
    %43 = arith.mulf %39, %39 : vector<256x128xf32>
    %cst_13 = arith.constant dense<0.000000e+00> : vector<128xf32>
    %44 = vector.multi_reduction <add>, %43, %cst_13 [0] : vector<256x128xf32> to vector<128xf32>
    %45 = vector.shape_cast %44 : vector<128xf32> to vector<1x128xf32>
    %46 = tpu.iota {dimensions = array<i32: 0>} : vector<8x128xi32>
    %c0_i32 = arith.constant 0 : i32
    %47 = vector.broadcast %c0_i32 : i32 to vector<8x128xi32>
    %48 = arith.cmpi eq, %46, %47 : vector<8x128xi32>
    %c1_i32 = arith.constant 1 : i32
    %49 = vector.broadcast %c1_i32 : i32 to vector<8x128xi32>
    %50 = arith.cmpi eq, %46, %49 : vector<8x128xi32>
    %cst_14 = arith.constant 0.000000e+00 : f32
    %51 = vector.shape_cast %45 : vector<1x128xf32> to vector<1x128xf32>
    %52 = vector.broadcast %51 : vector<1x128xf32> to vector<8x128xf32>
    %53 = vector.broadcast %cst_14 : f32 to vector<8x128xf32>
    %54 = arith.select %50, %52, %53 : vector<8x128xi1>, vector<8x128xf32>
    %55 = vector.shape_cast %42 : vector<1x128xf32> to vector<1x128xf32>
    %56 = vector.broadcast %55 : vector<1x128xf32> to vector<8x128xf32>
    %57 = arith.select %48, %56, %54 : vector<8x128xi1>, vector<8x128xf32>
    %c0_15 = arith.constant 0 : index
    %c0_16 = arith.constant 0 : index
    %58 = vector.load %arg5[%c0_15, %c0_16] : memref<8x128xf32, #tpu.memory_space<vmem>>, vector<8x128xf32>
    tpu.vector_store %arg5[%c0_15, %c0_16], %57 {strides = array<i32>} : memref<8x128xf32, #tpu.memory_space<vmem>>, vector<8x128xf32>,
    return
  }
  func.func @transform_0(%arg0: i32) -> i32 {
    %c0_i32 = arith.constant 0 : i32
    %c0_i32_0 = arith.constant 0 : i32
    return %c0_i32 : i32
  }
  func.func @transform_1(%arg0: i32) -> (i32, i32) {
    %c0_i32 = arith.constant 0 : i32
    %c0_i32_0 = arith.constant 0 : i32
    return %arg0, %c0_i32 : i32, i32
  }
  func.func @transform_2(%arg0: i32) -> (i32, i32) {
    %c0_i32 = arith.constant 0 : i32
    %c0_i32_0 = arith.constant 0 : i32
    %c0_i32_1 = arith.constant 0 : i32
    return %c0_i32, %c0_i32_0 : i32, i32
  }
  func.func @transform_3(%arg0: i32) -> (i32, i32) {
    %c0_i32 = arith.constant 0 : i32
    %c0_i32_0 = arith.constant 0 : i32
    return %arg0, %c0_i32 : i32, i32
  }
  func.func @transform_4(%arg0: i32) -> (i32, i32) {
    %c0_i32 = arith.constant 0 : i32
    %c0_i32_0 = arith.constant 0 : i32
    return %arg0, %c0_i32 : i32, i32
  }
}

module attributes {stable_mosaic.version = 11 : i64} {
  func.func @bn_apply_kernel(%arg0: i32, %arg1: memref<256x128xf32, #tpu.memory_space<vmem>>, %arg2: memref<1x128xf32, #tpu.memory_space<vmem>>, %arg3: memref<1x128xf32, #tpu.memory_space<vmem>>, %arg4: memref<256x128xf32, #tpu.memory_space<vmem>>) attributes {dimension_semantics = [#tpu.dimension_semantics<parallel>], iteration_bounds = array<i64: 2>, scalar_prefetch = 0 : i64, scratch_operands = 0 : i64, tpu.core_type = #tpu.core_type<tc>, window_params = [{transform_indices = @transform_0, window_bounds = array<i64: 256, 128>}, {pipeline_mode = #tpu.pipeline_mode<synchronous>, transform_indices = @transform_1, window_bounds = array<i64: 1, 128>}, {pipeline_mode = #tpu.pipeline_mode<synchronous>, transform_indices = @transform_2, window_bounds = array<i64: 1, 128>}, {transform_indices = @transform_3, window_bounds = array<i64: 256, 128>}]} {
    %c0 = arith.constant 0 : index
    %c0_0 = arith.constant 0 : index
    %0 = vector.load %arg1[%c0, %c0_0] : memref<256x128xf32, #tpu.memory_space<vmem>>, vector<256x128xf32>
    %c0_1 = arith.constant 0 : index
    %c0_2 = arith.constant 0 : index
    %1 = vector.load %arg2[%c0_1, %c0_2] : memref<1x128xf32, #tpu.memory_space<vmem>>, vector<1x128xf32>
    %2 = vector.broadcast %1 : vector<1x128xf32> to vector<256x128xf32>
    %3 = arith.mulf %0, %2 : vector<256x128xf32>
    %c0_3 = arith.constant 0 : index
    %c0_4 = arith.constant 0 : index
    %4 = vector.load %arg3[%c0_3, %c0_4] : memref<1x128xf32, #tpu.memory_space<vmem>>, vector<1x128xf32>
    %5 = vector.broadcast %4 : vector<1x128xf32> to vector<256x128xf32>
    %6 = arith.addf %3, %5 : vector<256x128xf32>
    %c0_5 = arith.constant 0 : index
    %c0_6 = arith.constant 0 : index
    %7 = vector.load %arg4[%c0_5, %c0_6] : memref<256x128xf32, #tpu.memory_space<vmem>>, vector<256x128xf32>
    tpu.vector_store %arg4[%c0_5, %c0_6], %6 {strides = array<i32>} : memref<256x128xf32, #tpu.memory_space<vmem>>, vector<256x128xf32>,
    return
  }
  func.func @transform_0(%arg0: i32) -> (i32, i32) {
    %c0_i32 = arith.constant 0 : i32
    %c0_i32_0 = arith.constant 0 : i32
    return %arg0, %c0_i32 : i32, i32
  }
  func.func @transform_1(%arg0: i32) -> (i32, i32) {
    %c0_i32 = arith.constant 0 : i32
    %c0_i32_0 = arith.constant 0 : i32
    %c0_i32_1 = arith.constant 0 : i32
    return %c0_i32, %c0_i32_0 : i32, i32
  }
  func.func @transform_2(%arg0: i32) -> (i32, i32) {
    %c0_i32 = arith.constant 0 : i32
    %c0_i32_0 = arith.constant 0 : i32
    %c0_i32_1 = arith.constant 0 : i32
    return %c0_i32, %c0_i32_0 : i32, i32
  }
  func.func @transform_3(%arg0: i32) -> (i32, i32) {
    %c0_i32 = arith.constant 0 : i32
    %c0_i32_0 = arith.constant 0 : i32
    return %arg0, %c0_i32 : i32, i32
  }
}

</mosaic_0001>

<llo_original>
// kernel: encoder_block_forward.3
$region0: #{encoder_block_forward.3}
  #allocation0 [shape = 'u32[]', space=smem, size = 0x4, offset = 0x4, fixed_abs, tag = 'smem constant byte address 0x4 - core index']
  #allocation1 [shape = 'u32[144,128]{1,0:T(1,128)}', space=vmem, size = 0x12000, scoped, tag = 'internal scratch']
  %s0 = inlined_call_operand.vmem [shape: f32[512,128], index: 0, kind: input, shape index: {}]
  %s1 = inlined_call_operand.vmem [shape: f32[1,128], index: 1, kind: input, shape index: {}]
  %s2 = inlined_call_operand.vmem [shape: f32[1,128], index: 2, kind: input, shape index: {}]
  %s3 = inlined_call_operand.vmem [shape: f32[512,128], index: 3, kind: output, shape index: {}]
  %s4 = sld [smem:[#allocation0]]
  $region45: #{encoder_block_forward.3} parent=0
    _
  %s6 = ssub.s32 1, %s4
  %s7 = scalar_select 0, %s6, %s4
  loop: start=0, step=1, limit=4
  $region2: #{encoder_block_forward.3} parent=0 // loop_pre_header
    _
  $region3: #{encoder_block_forward.3} parent=0 // loop_header
    %s9 = sphi 0, %s13
    %p10 = scmp.ge.s32.totalorder %s9, 4
    %s19 = sphi 0, %s21
    %s22 = sphi 0, %s19
    %s23 = sphi 0, %s22
    %s39 = sphi 0, %s23
    %s43 = sphi 0, %s43
    %s45 = sphi 0, %s43
    %s46 = sphi 0, %s45
    %s60 = sphi 0, %s46
    %s64 = sphi 0, %s64
    %s66 = sphi 0, %s64
    %s67 = sphi 0, %s66
    %s81 = sphi 0, %s67
    %s87 = sphi 0, %s89
    %s90 = sphi 0, %s87
    %s91 = sphi 0, %s90
    %s107 = sphi 0, %s91
  $region4: #{encoder_block_forward.3} parent=0 // loop_header_branch
    %12 = sbr.rel (%p10) target = $region8
  $region5: #{encoder_block_forward.3} parent=0 // loop_body
    %s14 = ssub.s32 %s9, 1
    %s15 = ssub.s32 %s9, 2
    %s16 = sadd.s32 %s9, 1
    %s17 = ssub.s32 %s9, %s16
    %p18 = scmp.eq.s32.totalorder %s17, 0
    %s20 = sadd.s32 %s19, 1
    %s21 = scalar_select %p18, %s19, %s20
    %p24 = pneg %p18
    %p25 = scmp.eq.s32.totalorder %s9, 1
    %p26 = por %p24, %p25
    %p27 = scmp.ne.s32.totalorder %s19, %s22
    %p28 = scmp.eq.s32.totalorder %s9, 0
    %p29 = por %p27, %p28
    %p30 = scmp.ne.s32.totalorder %s19, %s22
    %p31 = scmp.eq.s32.totalorder %s14, 1
    %p32 = por %p30, %p31
    %p33 = scmp.ne.s32.totalorder %s22, %s23
    %p34 = scmp.eq.s32.totalorder %s14, 0
    %p35 = por %p33, %p34
    %p36 = scmp.ne.s32.totalorder %s22, %s23
    %p37 = scmp.eq.s32.totalorder %s15, 1
    %p38 = por %p36, %p37
    %p40 = scmp.ne.s32.totalorder %s23, %s39
    %p41 = scmp.eq.s32.totalorder %s15, 0
    %p42 = por %p40, %p41
    %s44 = sadd.s32 %s43, 1
    %p47 = scmp.eq.s32.totalorder %s9, 1
    %p48 = scmp.ne.s32.totalorder %s43, %s45
    %p49 = scmp.eq.s32.totalorder %s9, 0
    %p50 = por %p48, %p49
    %p51 = scmp.ne.s32.totalorder %s43, %s45
    %p52 = scmp.eq.s32.totalorder %s14, 1
    %p53 = por %p51, %p52
    %p54 = scmp.ne.s32.totalorder %s45, %s46
    %p55 = scmp.eq.s32.totalorder %s14, 0
    %p56 = por %p54, %p55
    %p57 = scmp.ne.s32.totalorder %s45, %s46
    %p58 = scmp.eq.s32.totalorder %s15, 1
    %p59 = por %p57, %p58
    %p61 = scmp.ne.s32.totalorder %s46, %s60
    %p62 = scmp.eq.s32.totalorder %s15, 0
    %p63 = por %p61, %p62
    %s65 = sadd.s32 %s64, 1
    %p68 = scmp.eq.s32.totalorder %s9, 1
    %p69 = scmp.ne.s32.totalorder %s64, %s66
    %p70 = scmp.eq.s32.totalorder %s9, 0
    %p71 = por %p69, %p70
    %p72 = scmp.ne.s32.totalorder %s64, %s66
    %p73 = scmp.eq.s32.totalorder %s14, 1
    %p74 = por %p72, %p73
    %p75 = scmp.ne.s32.totalorder %s66, %s67
    %p76 = scmp.eq.s32.totalorder %s14, 0
    %p77 = por %p75, %p76
    %p78 = scmp.ne.s32.totalorder %s66, %s67
    %p79 = scmp.eq.s32.totalorder %s15, 1
    %p80 = por %p78, %p79
    %p82 = scmp.ne.s32.totalorder %s67, %s81
    %p83 = scmp.eq.s32.totalorder %s15, 0
    %p84 = por %p82, %p83
    %s85 = ssub.s32 %s9, %s16
    %p86 = scmp.eq.s32.totalorder %s85, 0
    %s88 = sadd.s32 %s87, 1
    %s89 = scalar_select %p86, %s87, %s88
    %p92 = pneg %p86
    %p93 = scmp.eq.s32.totalorder %s9, 1
    %p94 = por %p92, %p93
    %p95 = scmp.ne.s32.totalorder %s87, %s90
    %p96 = scmp.eq.s32.totalorder %s9, 0
    %p97 = por %p95, %p96
    %p98 = scmp.ne.s32.totalorder %s87, %s90
    %p99 = scmp.eq.s32.totalorder %s14, 1
    %p100 = por %p98, %p99
    %p101 = scmp.ne.s32.totalorder %s90, %s91
    %p102 = scmp.eq.s32.totalorder %s14, 0
    %p103 = por %p101, %p102
    %p104 = scmp.ne.s32.totalorder %s90, %s91
    %p105 = scmp.eq.s32.totalorder %s15, 1
    %p106 = por %p104, %p105
    %p108 = scmp.ne.s32.totalorder %s91, %s107
    %p109 = scmp.eq.s32.totalorder %s15, 0
    %p110 = por %p108, %p109
    %p111 = scmp.le.s32.totalorder 1, %s9
    %p112 = scmp.lt.s32.totalorder %s9, 3
    %p113 = pnand %p111, %p112
    %p114 = pneg %p113
    // Predicated region
    $region9: #{encoder_block_forward.3} parent=5 // pred_check
      _
    $region10: #{encoder_block_forward.3} parent=5 // pred_check_branch
      %116 = sbr.rel (%p113) target = $region12
    $region11: #{encoder_block_forward.3} parent=5 // pred_region
      %s117 = ssub.s32 %s9, 1
      // Predicated region
      $region13: #{encoder_block_forward.3} parent=11 // pred_check
        %p118 = pneg %p56
      $region14: #{encoder_block_forward.3} parent=11 // pred_check_branch
        %120 = sbr.rel (%p118) target = $region16
      $region15: #{encoder_block_forward.3} parent=11 // pred_region
        _
      $region16: #{encoder_block_forward.3} parent=11 // pred_fallthru
        _
      // Predicated region
      $region17: #{encoder_block_forward.3} parent=11 // pred_check
        %p121 = pneg %p77
      $region18: #{encoder_block_forward.3} parent=11 // pred_check_branch
        %123 = sbr.rel (%p121) target = $region20
      $region19: #{encoder_block_forward.3} parent=11 // pred_region
        _
      $region20: #{encoder_block_forward.3} parent=11 // pred_fallthru
        _
    $region12: #{encoder_block_forward.3} parent=5 // pred_fallthru
      _
    %p124 = scmp.lt.s32.totalorder %s9, 2
    // Predicated region
    $region21: #{encoder_block_forward.3} parent=5 // pred_check
      %p125 = pneg %p124
    $region22: #{encoder_block_forward.3} parent=5 // pred_check_branch
      %127 = sbr.rel (%p125) target = $region24
    $region23: #{encoder_block_forward.3} parent=5 // pred_region
      // Predicated region
      $region25: #{encoder_block_forward.3} parent=23 // pred_check
        %p128 = pneg %p29
      $region26: #{encoder_block_forward.3} parent=23 // pred_check_branch
        %130 = sbr.rel (%p128) target = $region28
      $region27: #{encoder_block_forward.3} parent=23 // pred_region
        %s131 = smul.u32 32, %s9
        %p132 = scmp.lt.s32.totalorder %s131, 63
        %s133 = scalar_select %p132, %s131, 63
        %s134 = smul.addr %s133, 8
        %s135 = scalar_lea.vmem %s0, %s134
        %s136 = smul.u32 32, %s9
      $region28: #{encoder_block_forward.3} parent=23 // pred_fallthru
        _
    $region24: #{encoder_block_forward.3} parent=5 // pred_fallthru
      _
    %p137 = scmp.le.s32.totalorder 1, %s9
    %p138 = scmp.lt.s32.totalorder %s9, 3
    %p139 = pnand %p137, %p138
    %p140 = pneg %p139
    // Predicated region
    $region29: #{encoder_block_forward.3} parent=5 // pred_check
      _
    $region30: #{encoder_block_forward.3} parent=5 // pred_check_branch
      %142 = sbr.rel (%p139) target = $region32
    $region31: #{encoder_block_forward.3} parent=5 // pred_region
      %s143 = ssub.s32 %s9, 1
      %s144 = smul.u32 32, %s14
      %p145 = scmp.lt.s32.totalorder %s144, 63
      %s146 = scalar_select %p145, %s144, 63
      %s147 = smul.addr %s146, 8
      %s148 = scalar_lea.vmem %s0, %s147
      %p149 = pneg %p35
      %p150 = pneg %p32
      %p151 = pneg %p56
      %p152 = pneg %p53
      %p153 = pneg %p77
      %p154 = pneg %p74
      %p155 = pneg %p103
      %p156 = pneg %p100
      %s157 = smul.u32 32, %s14
      %p158 = scmp.lt.s32.totalorder %s157, 63
      %s159 = scalar_select %p158, %s157, 63
      %s160 = smul.addr %s159, 8
      %s161 = scalar_lea.vmem %s3, %s160
      %s162 = smul.u32 32, %s14
      %p163 = scmp.lt.s32.totalorder %s162, 63
      %s164 = scalar_select %p163, %s162, 63
      %s165 = smul.addr %s164, 8
      %s166 = scalar_lea.vmem %s0, %s165
      %s167 = smul.u32 32, %s14
      %s168 = smul.u32 32, %s14
      %p169 = scmp.lt.s32.totalorder %s168, 63
      %s170 = scalar_select %p169, %s168, 63
      %s171 = smul.addr %s170, 8
      %s172 = scalar_lea.vmem %s3, %s171
      %s173 = smul.u32 32, %s14
      %v174 = vld [vmem:[%s166] sm:$0xff]
      %v175 = vld [vmem:[%s166 + $0x8] sm:$0xff]
      %v176 = vld [vmem:[%s166 + $0x10] sm:$0xff]
      %v177 = vld [vmem:[%s166 + $0x18] sm:$0xff]
      %v178 = vld [vmem:[%s166 + $0x20] sm:$0xff]
      %v179 = vld [vmem:[%s166 + $0x28] sm:$0xff]
      %v180 = vld [vmem:[%s166 + $0x30] sm:$0xff]
      %v181 = vld [vmem:[%s166 + $0x38] sm:$0xff]
      %v182 = vld [vmem:[%s166 + $0x40] sm:$0xff]
      %v183 = vld [vmem:[%s166 + $0x48] sm:$0xff]
      %v184 = vld [vmem:[%s166 + $0x50] sm:$0xff]
      %v185 = vld [vmem:[%s166 + $0x58] sm:$0xff]
      %v186 = vld [vmem:[%s166 + $0x60] sm:$0xff]
      %v187 = vld [vmem:[%s166 + $0x68] sm:$0xff]
      %v188 = vld [vmem:[%s166 + $0x70] sm:$0xff]
      %v189 = vld [vmem:[%s166 + $0x78] sm:$0xff]
      %v190 = vld [vmem:[%s166 + $0x80] sm:$0xff]
      %v191 = vld [vmem:[%s166 + $0x88] sm:$0xff]
      %v192 = vld [vmem:[%s166 + $0x90] sm:$0xff]
      %v193 = vld [vmem:[%s166 + $0x98] sm:$0xff]
      %v194 = vld [vmem:[%s166 + $0xa0] sm:$0xff]
      %v195 = vld [vmem:[%s166 + $0xa8] sm:$0xff]
      %v196 = vld [vmem:[%s166 + $0xb0] sm:$0xff]
      %v197 = vld [vmem:[%s166 + $0xb8] sm:$0xff]
      %v198 = vld [vmem:[%s166 + $0xc0] sm:$0xff]
      %v199 = vld [vmem:[%s166 + $0xc8] sm:$0xff]
      %v200 = vld [vmem:[%s166 + $0xd0] sm:$0xff]
      %v201 = vld [vmem:[%s166 + $0xd8] sm:$0xff]
      %v202 = vld [vmem:[%s166 + $0xe0] sm:$0xff]
      %v203 = vld [vmem:[%s166 + $0xe8] sm:$0xff]
      %v204 = vld [vmem:[%s166 + $0xf0] sm:$0xff]
      %v205 = vld [vmem:[%s166 + $0xf8] sm:$0xff]
      %v206 = vld [vmem:[%s1] sm:$0x1]
      %v208 = vlaneseq
      %v209 = vshrl.u32 %v208, 7
      %v210 = vsub.s32 0, %v209
      %v211 = vrot.slane %v206, %v210
      %v213 = vmul.f32 %v174, %v211
      %v214 = vmul.f32 %v175, %v211
      %v215 = vmul.f32 %v176, %v211
      %v216 = vmul.f32 %v177, %v211
      %v217 = vmul.f32 %v178, %v211
      %v218 = vmul.f32 %v179, %v211
      %v219 = vmul.f32 %v180, %v211
      %v220 = vmul.f32 %v181, %v211
      %v221 = vmul.f32 %v182, %v211
      %v222 = vmul.f32 %v183, %v211
      %v223 = vmul.f32 %v184, %v211
      %v224 = vmul.f32 %v185, %v211
      %v225 = vmul.f32 %v186, %v211
      %v226 = vmul.f32 %v187, %v211
      %v227 = vmul.f32 %v188, %v211
      %v228 = vmul.f32 %v189, %v211
      %v229 = vmul.f32 %v190, %v211
      %v230 = vmul.f32 %v191, %v211
      %v231 = vmul.f32 %v192, %v211
      %v232 = vmul.f32 %v193, %v211
      %v233 = vmul.f32 %v194, %v211
      %v234 = vmul.f32 %v195, %v211
      %v235 = vmul.f32 %v196, %v211
      %v236 = vmul.f32 %v197, %v211
      %v237 = vmul.f32 %v198, %v211
      %v238 = vmul.f32 %v199, %v211
      %v239 = vmul.f32 %v200, %v211
      %v240 = vmul.f32 %v201, %v211
      %v241 = vmul.f32 %v202, %v211
      %v242 = vmul.f32 %v203, %v211
      %v243 = vmul.f32 %v204, %v211
      %v244 = vmul.f32 %v205, %v211
      %v245 = vld [vmem:[%s2] sm:$0x1]
      %v247 = vlaneseq
      %v248 = vshrl.u32 %v247, 7
      %v249 = vsub.s32 0, %v248
      %v250 = vrot.slane %v245, %v249
      %v252 = vadd.f32 %v213, %v250
      %v253 = vadd.f32 %v214, %v250
      %v254 = vadd.f32 %v215, %v250
      %v255 = vadd.f32 %v216, %v250
      %v256 = vadd.f32 %v217, %v250
      %v257 = vadd.f32 %v218, %v250
      %v258 = vadd.f32 %v219, %v250
      %v259 = vadd.f32 %v220, %v250
      %v260 = vadd.f32 %v221, %v250
      %v261 = vadd.f32 %v222, %v250
      %v262 = vadd.f32 %v223, %v250
      %v263 = vadd.f32 %v224, %v250
      %v264 = vadd.f32 %v225, %v250
      %v265 = vadd.f32 %v226, %v250
      %v266 = vadd.f32 %v227, %v250
      %v267 = vadd.f32 %v228, %v250
      %v268 = vadd.f32 %v229, %v250
      %v269 = vadd.f32 %v230, %v250
      %v270 = vadd.f32 %v231, %v250
      %v271 = vadd.f32 %v232, %v250
      %v272 = vadd.f32 %v233, %v250
      %v273 = vadd.f32 %v234, %v250
      %v274 = vadd.f32 %v235, %v250
      %v275 = vadd.f32 %v236, %v250
      %v276 = vadd.f32 %v237, %v250
      %v277 = vadd.f32 %v238, %v250
      %v278 = vadd.f32 %v239, %v250
      %v279 = vadd.f32 %v240, %v250
      %v280 = vadd.f32 %v241, %v250
      %v281 = vadd.f32 %v242, %v250
      %v282 = vadd.f32 %v243, %v250
      %v283 = vadd.f32 %v244, %v250
      %284 = vst [vmem:[%s172] sm:$0xff] %v252
      %285 = vst [vmem:[%s172 + $0x8] sm:$0xff] %v253
      %286 = vst [vmem:[%s172 + $0x10] sm:$0xff] %v254
      %287 = vst [vmem:[%s172 + $0x18] sm:$0xff] %v255
      %288 = vst [vmem:[%s172 + $0x20] sm:$0xff] %v256
      %289 = vst [vmem:[%s172 + $0x28] sm:$0xff] %v257
      %290 = vst [vmem:[%s172 + $0x30] sm:$0xff] %v258
      %291 = vst [vmem:[%s172 + $0x38] sm:$0xff] %v259
      %292 = vst [vmem:[%s172 + $0x40] sm:$0xff] %v260
      %293 = vst [vmem:[%s172 + $0x48] sm:$0xff] %v261
      %294 = vst [vmem:[%s172 + $0x50] sm:$0xff] %v262
      %295 = vst [vmem:[%s172 + $0x58] sm:$0xff] %v263
      %296 = vst [vmem:[%s172 + $0x60] sm:$0xff] %v264
      %297 = vst [vmem:[%s172 + $0x68] sm:$0xff] %v265
      %298 = vst [vmem:[%s172 + $0x70] sm:$0xff] %v266
      %299 = vst [vmem:[%s172 + $0x78] sm:$0xff] %v267
      %300 = vst [vmem:[%s172 + $0x80] sm:$0xff] %v268
      %301 = vst [vmem:[%s172 + $0x88] sm:$0xff] %v269
      %302 = vst [vmem:[%s172 + $0x90] sm:$0xff] %v270
      %303 = vst [vmem:[%s172 + $0x98] sm:$0xff] %v271
      %304 = vst [vmem:[%s172 + $0xa0] sm:$0xff] %v272
      %305 = vst [vmem:[%s172 + $0xa8] sm:$0xff] %v273
      %306 = vst [vmem:[%s172 + $0xb0] sm:$0xff] %v274
      %307 = vst [vmem:[%s172 + $0xb8] sm:$0xff] %v275
      %308 = vst [vmem:[%s172 + $0xc0] sm:$0xff] %v276
      %309 = vst [vmem:[%s172 + $0xc8] sm:$0xff] %v277
      %310 = vst [vmem:[%s172 + $0xd0] sm:$0xff] %v278
      %311 = vst [vmem:[%s172 + $0xd8] sm:$0xff] %v279
      %312 = vst [vmem:[%s172 + $0xe0] sm:$0xff] %v280
      %313 = vst [vmem:[%s172 + $0xe8] sm:$0xff] %v281
      %314 = vst [vmem:[%s172 + $0xf0] sm:$0xff] %v282
      %315 = vst [vmem:[%s172 + $0xf8] sm:$0xff] %v283
      %s316 = smul.u32 32, %s14
      %p317 = scmp.lt.s32.totalorder %s316, 63
      %s318 = scalar_select %p317, %s316, 63
      %s319 = smul.addr %s318, 8
      %s320 = scalar_lea.vmem %s3, %s319
      // Predicated region
      $region33: #{encoder_block_forward.3} parent=31 // pred_check
        %p321 = pneg %p100
      $region34: #{encoder_block_forward.3} parent=31 // pred_check_branch
        %323 = sbr.rel (%p321) target = $region36
      $region35: #{encoder_block_forward.3} parent=31 // pred_region
        %s324 = smul.u32 32, %s14
      $region36: #{encoder_block_forward.3} parent=31 // pred_fallthru
        _
    $region32: #{encoder_block_forward.3} parent=5 // pred_fallthru
      _
    %p325 = scmp.le.s32.totalorder 2, %s9
    // Predicated region
    $region37: #{encoder_block_forward.3} parent=5 // pred_check
      %p326 = pneg %p325
    $region38: #{encoder_block_forward.3} parent=5 // pred_check_branch
      %328 = sbr.rel (%p326) target = $region40
    $region39: #{encoder_block_forward.3} parent=5 // pred_region
      %s329 = ssub.s32 %s9, 2
      // Predicated region
      $region41: #{encoder_block_forward.3} parent=39 // pred_check
        %p330 = pneg %p106
      $region42: #{encoder_block_forward.3} parent=39 // pred_check_branch
        %332 = sbr.rel (%p330) target = $region44
      $region43: #{encoder_block_forward.3} parent=39 // pred_region
        %s333 = smul.u32 32, %s15
        %p334 = scmp.lt.s32.totalorder %s333, 63
        %s335 = scalar_select %p334, %s333, 63
        %s336 = smul.addr %s335, 8
        %s337 = scalar_lea.vmem %s3, %s336
      $region44: #{encoder_block_forward.3} parent=39 // pred_fallthru
        _
    $region40: #{encoder_block_forward.3} parent=5 // pred_fallthru
      _
  $region6: #{encoder_block_forward.3} parent=0 // loop_footer
    %s13 = sadd.s32 1, %s9
  $region7: #{encoder_block_forward.3} parent=0 // loop_footer_branch
    %8 = sbr.rel target = $region3
  $region8: #{encoder_block_forward.3} parent=0 // loop_exit
    _

// kernel: encoder_block_forward.2
$region0: #{encoder_block_forward.2}
  #allocation0 [shape = 'u32[]', space=smem, size = 0x4, offset = 0x4, fixed_abs, tag = 'smem constant byte address 0x4 - core index']
  #allocation1 [shape = 'u32[144,128]{1,0:T(1,128)}', space=vmem, size = 0x12000, scoped, tag = 'internal scratch']
  #allocation2 [shape = 's32[1]{0:T(128)S(6)}', space=smem, size = 0x200, scoped, tag = 'scoped memory for encoder_block_forward.2']
  %s0 = inlined_call_operand.<no memory space> [shape: s32[1], index: 0, kind: input, shape index: {}]
  %s1 = inlined_call_operand.vmem [shape: bf16[512,36], index: 1, kind: input, shape index: {}]
  %s2 = inlined_call_operand.vmem [shape: bf16[36,128], index: 2, kind: input, shape index: {}]
  %s3 = inlined_call_operand.vmem [shape: f32[512,128], index: 3, kind: output, shape index: {0}]
  %s4 = inlined_call_operand.vmem [shape: f32[16,128], index: 4, kind: output, shape index: {1}]
  %5 = xla_tuple %s3, %s4
  %s6 = sld [smem:[#allocation0]]
  $region53: #{encoder_block_forward.2} parent=0
    _
  %s8 = ssub.s32 1, %s6
  %s9 = scalar_select 0, %s8, %s6
  %10 = sst [smem:[#allocation2]] %s0
  loop: start=0, step=1, limit=4
  $region2: #{encoder_block_forward.2} parent=0 // loop_pre_header
    _
  $region3: #{encoder_block_forward.2} parent=0 // loop_header
    %s12 = sphi 0, %s16
    %p13 = scmp.ge.s32.totalorder %s12, 4
    %s20 = sphi 0, %s20
    %s22 = sphi 0, %s20
    %s23 = sphi 0, %s22
    %s37 = sphi 0, %s23
    %s43 = sphi 0, %s45
    %s46 = sphi 0, %s43
    %s47 = sphi 0, %s46
    %s63 = sphi 0, %s47
    %s67 = sphi 0, %s67
    %s69 = sphi 0, %s67
    %s70 = sphi 0, %s69
    %s84 = sphi 0, %s70
    %s90 = sphi 0, %s92
    %s93 = sphi 0, %s90
    %s94 = sphi 0, %s93
    %s110 = sphi 0, %s94
    %s116 = sphi 0, %s118
    %s119 = sphi 0, %s116
    %s120 = sphi 0, %s119
    %s136 = sphi 0, %s120
  $region4: #{encoder_block_forward.2} parent=0 // loop_header_branch
    %15 = sbr.rel (%p13) target = $region8
  $region5: #{encoder_block_forward.2} parent=0 // loop_body
    %s17 = ssub.s32 %s12, 1
    %s18 = ssub.s32 %s12, 2
    %s19 = sadd.s32 %s12, 1
    %s21 = sadd.s32 %s20, 1
    %p24 = scmp.eq.s32.totalorder %s12, 1
    %p25 = scmp.ne.s32.totalorder %s20, %s22
    %p26 = scmp.eq.s32.totalorder %s12, 0
    %p27 = por %p25, %p26
    %p28 = scmp.ne.s32.totalorder %s20, %s22
    %p29 = scmp.eq.s32.totalorder %s17, 1
    %p30 = por %p28, %p29
    %p31 = scmp.ne.s32.totalorder %s22, %s23
    %p32 = scmp.eq.s32.totalorder %s17, 0
    %p33 = por %p31, %p32
    %p34 = scmp.ne.s32.totalorder %s22, %s23
    %p35 = scmp.eq.s32.totalorder %s18, 1
    %p36 = por %p34, %p35
    %p38 = scmp.ne.s32.totalorder %s23, %s37
    %p39 = scmp.eq.s32.totalorder %s18, 0
    %p40 = por %p38, %p39
    %s41 = ssub.s32 %s12, %s19
    %p42 = scmp.eq.s32.totalorder %s41, 0
    %s44 = sadd.s32 %s43, 1
    %s45 = scalar_select %p42, %s43, %s44
    %p48 = pneg %p42
    %p49 = scmp.eq.s32.totalorder %s12, 1
    %p50 = por %p48, %p49
    %p51 = scmp.ne.s32.totalorder %s43, %s46
    %p52 = scmp.eq.s32.totalorder %s12, 0
    %p53 = por %p51, %p52
    %p54 = scmp.ne.s32.totalorder %s43, %s46
    %p55 = scmp.eq.s32.totalorder %s17, 1
    %p56 = por %p54, %p55
    %p57 = scmp.ne.s32.totalorder %s46, %s47
    %p58 = scmp.eq.s32.totalorder %s17, 0
    %p59 = por %p57, %p58
    %p60 = scmp.ne.s32.totalorder %s46, %s47
    %p61 = scmp.eq.s32.totalorder %s18, 1
    %p62 = por %p60, %p61
    %p64 = scmp.ne.s32.totalorder %s47, %s63
    %p65 = scmp.eq.s32.totalorder %s18, 0
    %p66 = por %p64, %p65
    %s68 = sadd.s32 %s67, 1
    %p71 = scmp.eq.s32.totalorder %s12, 1
    %p72 = scmp.ne.s32.totalorder %s67, %s69
    %p73 = scmp.eq.s32.totalorder %s12, 0
    %p74 = por %p72, %p73
    %p75 = scmp.ne.s32.totalorder %s67, %s69
    %p76 = scmp.eq.s32.totalorder %s17, 1
    %p77 = por %p75, %p76
    %p78 = scmp.ne.s32.totalorder %s69, %s70
    %p79 = scmp.eq.s32.totalorder %s17, 0
    %p80 = por %p78, %p79
    %p81 = scmp.ne.s32.totalorder %s69, %s70
    %p82 = scmp.eq.s32.totalorder %s18, 1
    %p83 = por %p81, %p82
    %p85 = scmp.ne.s32.totalorder %s70, %s84
    %p86 = scmp.eq.s32.totalorder %s18, 0
    %p87 = por %p85, %p86
    %s88 = ssub.s32 %s12, %s19
    %p89 = scmp.eq.s32.totalorder %s88, 0
    %s91 = sadd.s32 %s90, 1
    %s92 = scalar_select %p89, %s90, %s91
    %p95 = pneg %p89
    %p96 = scmp.eq.s32.totalorder %s12, 1
    %p97 = por %p95, %p96
    %p98 = scmp.ne.s32.totalorder %s90, %s93
    %p99 = scmp.eq.s32.totalorder %s12, 0
    %p100 = por %p98, %p99
    %p101 = scmp.ne.s32.totalorder %s90, %s93
    %p102 = scmp.eq.s32.totalorder %s17, 1
    %p103 = por %p101, %p102
    %p104 = scmp.ne.s32.totalorder %s93, %s94
    %p105 = scmp.eq.s32.totalorder %s17, 0
    %p106 = por %p104, %p105
    %p107 = scmp.ne.s32.totalorder %s93, %s94
    %p108 = scmp.eq.s32.totalorder %s18, 1
    %p109 = por %p107, %p108
    %p111 = scmp.ne.s32.totalorder %s94, %s110
    %p112 = scmp.eq.s32.totalorder %s18, 0
    %p113 = por %p111, %p112
    %s114 = ssub.s32 %s12, %s19
    %p115 = scmp.eq.s32.totalorder %s114, 0
    %s117 = sadd.s32 %s116, 1
    %s118 = scalar_select %p115, %s116, %s117
    %p121 = pneg %p115
    %p122 = scmp.eq.s32.totalorder %s12, 1
    %p123 = por %p121, %p122
    %p124 = scmp.ne.s32.totalorder %s116, %s119
    %p125 = scmp.eq.s32.totalorder %s12, 0
    %p126 = por %p124, %p125
    %p127 = scmp.ne.s32.totalorder %s116, %s119
    %p128 = scmp.eq.s32.totalorder %s17, 1
    %p129 = por %p127, %p128
    %p130 = scmp.ne.s32.totalorder %s119, %s120
    %p131 = scmp.eq.s32.totalorder %s17, 0
    %p132 = por %p130, %p131
    %p133 = scmp.ne.s32.totalorder %s119, %s120
    %p134 = scmp.eq.s32.totalorder %s18, 1
    %p135 = por %p133, %p134
    %p137 = scmp.ne.s32.totalorder %s120, %s136
    %p138 = scmp.eq.s32.totalorder %s18, 0
    %p139 = por %p137, %p138
    %p140 = scmp.le.s32.totalorder 1, %s12
    %p141 = scmp.lt.s32.totalorder %s12, 3
    %p142 = pnand %p140, %p141
    %p143 = pneg %p142
    // Predicated region
    $region9: #{encoder_block_forward.2} parent=5 // pred_check
      _
    $region10: #{encoder_block_forward.2} parent=5 // pred_check_branch
      %145 = sbr.rel (%p142) target = $region12
    $region11: #{encoder_block_forward.2} parent=5 // pred_region
      %s146 = ssub.s32 %s12, 1
      // Predicated region
      $region13: #{encoder_block_forward.2} parent=11 // pred_check
        %p147 = pneg %p33
      $region14: #{encoder_block_forward.2} parent=11 // pred_check_branch
        %149 = sbr.rel (%p147) target = $region16
      $region15: #{encoder_block_forward.2} parent=11 // pred_region
        _
      $region16: #{encoder_block_forward.2} parent=11 // pred_fallthru
        _
      // Predicated region
      $region17: #{encoder_block_forward.2} parent=11 // pred_check
        %p150 = pneg %p80
      $region18: #{encoder_block_forward.2} parent=11 // pred_check_branch
        %152 = sbr.rel (%p150) target = $region20
      $region19: #{encoder_block_forward.2} parent=11 // pred_region
        _
      $region20: #{encoder_block_forward.2} parent=11 // pred_fallthru
        _
    $region12: #{encoder_block_forward.2} parent=5 // pred_fallthru
      _
    %p153 = scmp.lt.s32.totalorder %s12, 2
    // Predicated region
    $region21: #{encoder_block_forward.2} parent=5 // pred_check
      %p154 = pneg %p153
    $region22: #{encoder_block_forward.2} parent=5 // pred_check_branch
      %156 = sbr.rel (%p154) target = $region24
    $region23: #{encoder_block_forward.2} parent=5 // pred_region
      // Predicated region
      $region25: #{encoder_block_forward.2} parent=23 // pred_check
        %p157 = pneg %p53
      $region26: #{encoder_block_forward.2} parent=23 // pred_check_branch
        %159 = sbr.rel (%p157) target = $region28
      $region27: #{encoder_block_forward.2} parent=23 // pred_region
        %s160 = smul.u32 32, %s12
        %p161 = scmp.lt.s32.totalorder %s160, 63
        %s162 = scalar_select %p161, %s160, 63
        %s163 = smul.addr %s162, 4
        %s164 = scalar_lea.vmem %s1, %s163
        %s165 = smul.u32 32, %s12
      $region28: #{encoder_block_forward.2} parent=23 // pred_fallthru
        _
    $region24: #{encoder_block_forward.2} parent=5 // pred_fallthru
      _
    %p166 = scmp.le.s32.totalorder 1, %s12
    %p167 = scmp.lt.s32.totalorder %s12, 3
    %p168 = pnand %p166, %p167
    %p169 = pneg %p168
    // Predicated region
    $region29: #{encoder_block_forward.2} parent=5 // pred_check
      _
    $region30: #{encoder_block_forward.2} parent=5 // pred_check_branch
      %171 = sbr.rel (%p168) target = $region32
    $region31: #{encoder_block_forward.2} parent=5 // pred_region
      %s172 = ssub.s32 %s12, 1
      %p173 = pneg %p33
      %p174 = pneg %p30
      %s175 = smul.u32 32, %s17
      %p176 = scmp.lt.s32.totalorder %s175, 63
      %s177 = scalar_select %p176, %s175, 63
      %s178 = smul.addr %s177, 4
      %s179 = scalar_lea.vmem %s1, %s178
      %p180 = pneg %p59
      %p181 = pneg %p56
      %p182 = pneg %p80
      %p183 = pneg %p77
      %p184 = pneg %p106
      %p185 = pneg %p103
      %s186 = smul.u32 32, %s17
      %p187 = scmp.lt.s32.totalorder %s186, 63
      %s188 = scalar_select %p187, %s186, 63
      %s189 = smul.addr %s188, 8
      %s190 = scalar_lea.vmem %s3, %s189
      %p191 = pneg %p132
      %p192 = pneg %p129
      %p193 = scmp.lt.s32.totalorder %s17, 1
      %s194 = scalar_select %p193, %s17, 1
      %s195 = smul.addr %s194, 8
      %s196 = scalar_lea.vmem %s4, %s195
      %s197 = smul.u32 32, %s17
      %p198 = scmp.lt.s32.totalorder %s197, 63
      %s199 = scalar_select %p198, %s197, 63
      %s200 = smul.addr %s199, 4
      %s201 = scalar_lea.vmem %s1, %s200
      %s202 = smul.u32 32, %s17
      %s203 = smul.u32 32, %s17
      %p204 = scmp.lt.s32.totalorder %s203, 63
      %s205 = scalar_select %p204, %s203, 63
      %s206 = smul.addr %s205, 8
      %s207 = scalar_lea.vmem %s3, %s206
      %s208 = smul.u32 32, %s17
      %p209 = scmp.lt.s32.totalorder %s17, 1
      %s210 = scalar_select %p209, %s17, 1
      %s211 = smul.addr %s210, 8
      %s212 = scalar_lea.vmem %s4, %s211
      %v214 = vld [vmem:[%s201] sm:$0xf]
      %v215 = vld [vmem:[%s201 + $0x4] sm:$0xf]
      %v216 = vld [vmem:[%s201 + $0x8] sm:$0xf]
      %v217 = vld [vmem:[%s201 + $0xc] sm:$0xf]
      %v218 = vld [vmem:[%s201 + $0x10] sm:$0xf]
      %v219 = vld [vmem:[%s201 + $0x14] sm:$0xf]
      %v220 = vld [vmem:[%s201 + $0x18] sm:$0xf]
      %v221 = vld [vmem:[%s201 + $0x1c] sm:$0xf]
      %v222 = vld [vmem:[%s201 + $0x20] sm:$0xf]
      %v223 = vld [vmem:[%s201 + $0x24] sm:$0xf]
      %v224 = vld [vmem:[%s201 + $0x28] sm:$0xf]
      %v225 = vld [vmem:[%s201 + $0x2c] sm:$0xf]
      %v226 = vld [vmem:[%s201 + $0x30] sm:$0xf]
      %v227 = vld [vmem:[%s201 + $0x34] sm:$0xf]
      %v228 = vld [vmem:[%s201 + $0x38] sm:$0xf]
      %v229 = vld [vmem:[%s201 + $0x3c] sm:$0xf]
      %v230 = vld [vmem:[%s201 + $0x40] sm:$0xf]
      %v231 = vld [vmem:[%s201 + $0x44] sm:$0xf]
      %v232 = vld [vmem:[%s201 + $0x48] sm:$0xf]
      %v233 = vld [vmem:[%s201 + $0x4c] sm:$0xf]
      %v234 = vld [vmem:[%s201 + $0x50] sm:$0xf]
      %v235 = vld [vmem:[%s201 + $0x54] sm:$0xf]
      %v236 = vld [vmem:[%s201 + $0x58] sm:$0xf]
      %v237 = vld [vmem:[%s201 + $0x5c] sm:$0xf]
      %v238 = vld [vmem:[%s201 + $0x60] sm:$0xf]
      %v239 = vld [vmem:[%s201 + $0x64] sm:$0xf]
      %v240 = vld [vmem:[%s201 + $0x68] sm:$0xf]
      %v241 = vld [vmem:[%s201 + $0x6c] sm:$0xf]
      %v242 = vld [vmem:[%s201 + $0x70] sm:$0xf]
      %v243 = vld [vmem:[%s201 + $0x74] sm:$0xf]
      %v244 = vld [vmem:[%s201 + $0x78] sm:$0xf]
      %v245 = vld [vmem:[%s201 + $0x7c] sm:$0xf]
      %v246 = vld [vmem:[%s2] sm:$0xf]
      %v247 = vld [vmem:[%s2 + $0x4] sm:$0xf]
      %v248 = vld [vmem:[%s2 + $0x8] sm:$0xf]
      %v249 = vld [vmem:[%s2 + $0xc] sm:$0xf]
      %v250 = vld [vmem:[%s2 + $0x10] sm:$0x3]
      %v283 = vunpack.c.l.b16 %v214
      %v284 = vunpack.c.l.b16 %v215
      %v285 = vunpack.c.l.b16 %v216
      %v286 = vunpack.c.l.b16 %v217
      %v287 = vunpack.c.l.b16 %v218
      %v288 = vunpack.c.l.b16 %v219
      %v289 = vunpack.c.l.b16 %v220
      %v290 = vunpack.c.l.b16 %v221
      %v291 = vunpack.c.l.b16 %v222
      %v292 = vunpack.c.l.b16 %v223
      %v293 = vunpack.c.l.b16 %v224
      %v294 = vunpack.c.l.b16 %v225
      %v295 = vunpack.c.l.b16 %v226
      %v296 = vunpack.c.l.b16 %v227
      %v297 = vunpack.c.l.b16 %v228
      %v298 = vunpack.c.l.b16 %v229
      %v299 = vunpack.c.l.b16 %v230
      %v300 = vunpack.c.l.b16 %v231
      %v301 = vunpack.c.l.b16 %v232
      %v302 = vunpack.c.l.b16 %v233
      %v303 = vunpack.c.l.b16 %v234
      %v304 = vunpack.c.l.b16 %v235
      %v305 = vunpack.c.l.b16 %v236
      %v306 = vunpack.c.l.b16 %v237
      %v307 = vunpack.c.l.b16 %v238
      %v308 = vunpack.c.l.b16 %v239
      %v309 = vunpack.c.l.b16 %v240
      %v310 = vunpack.c.l.b16 %v241
      %v311 = vunpack.c.l.b16 %v242
      %v312 = vunpack.c.l.b16 %v243
      %v313 = vunpack.c.l.b16 %v244
      %v314 = vunpack.c.l.b16 %v245
      %v315 = vpack.c.b16 %v284, %v283
      %v316 = vpack.c.b16 %v286, %v285
      %v317 = vpack.c.b16 %v288, %v287
      %v318 = vpack.c.b16 %v290, %v289
      %v319 = vpack.c.b16 %v292, %v291
      %v320 = vpack.c.b16 %v294, %v293
      %v321 = vpack.c.b16 %v296, %v295
      %v322 = vpack.c.b16 %v298, %v297
      %v323 = vpack.c.b16 %v300, %v299
      %v324 = vpack.c.b16 %v302, %v301
      %v325 = vpack.c.b16 %v304, %v303
      %v326 = vpack.c.b16 %v306, %v305
      %v327 = vpack.c.b16 %v308, %v307
      %v328 = vpack.c.b16 %v310, %v309
      %v329 = vpack.c.b16 %v312, %v311
      %v330 = vpack.c.b16 %v314, %v313
      %v336 = vunpack.c.l.b16 %v246
      %v337 = vunpack.c.l.b16 %v247
      %v338 = vunpack.c.l.b16 %v248
      %v339 = vunpack.c.l.b16 %v249
      %v340 = vunpack.c.l.b16 %v250
      %v341 = vpack.c.b16 %v337, %v336
      %v342 = vpack.c.b16 %v339, %v338
      %v343 = vpack.c.b16 %v340, %v340
      %vm346 = vcmask 293888
      %v348 = vsel %vm346, %v315, 0
      %v351 = vsel %vm346, %v316, 0
      %v354 = vsel %vm346, %v317, 0
      %v357 = vsel %vm346, %v318, 0
      %v360 = vsel %vm346, %v319, 0
      %v363 = vsel %vm346, %v320, 0
      %v366 = vsel %vm346, %v321, 0
      %v369 = vsel %vm346, %v322, 0
      %v372 = vsel %vm346, %v323, 0
      %v375 = vsel %vm346, %v324, 0
      %v378 = vsel %vm346, %v325, 0
      %v381 = vsel %vm346, %v326, 0
      %v384 = vsel %vm346, %v327, 0
      %v387 = vsel %vm346, %v328, 0
      %v390 = vsel %vm346, %v329, 0
      %v393 = vsel %vm346, %v330, 0
      %vm395 = vcmask 1041408
      %v397 = vsel %vm395, %v343, 0
      %399 = vmatprep.subr.bf16.mxu0 0
      %400 = vmatpush1.bf16.msra.mxu0 %v341
      %401 = vmatprep.subr.bf16.mxu0 0
      %402 = vmatpush1.bf16.msra.mxu0 %v342
      %403 = vmatprep.subr.bf16.mxu0 0
      %404 = vmatpush1.bf16.msra.mxu0 %v397
      %405 = vmatprep.subr.bf16.mxu0 0
      %406 = vmatpush1.bf16.msra.mxu0 0
      %407 = vmatprep.subr.bf16.mxu0 0
      %408 = vmatpush1.bf16.msra.mxu0 0
      %409 = vmatprep.subr.bf16.mxu0 0
      %410 = vmatpush1.bf16.msra.mxu0 0
      %411 = vmatprep.subr.bf16.mxu0 0
      %412 = vmatpush1.bf16.msra.mxu0 0
      %413 = vmatprep.subr.bf16.mxu0 0
      %414 = vmatpush1.bf16.msra.mxu0 0
      %415 = vmatprep.subr.bf16.mxu0 0
      %416 = vmatpush1.bf16.msra.mxu0 0
      %417 = vmatprep.subr.bf16.mxu0 0
      %418 = vmatpush1.bf16.msra.mxu0 0
      %419 = vmatprep.subr.bf16.mxu0 0
      %420 = vmatpush1.bf16.msra.mxu0 0
      %421 = vmatprep.subr.bf16.mxu0 0
      %422 = vmatpush1.bf16.msra.mxu0 0
      %423 = vmatprep.subr.bf16.mxu0 0
      %424 = vmatpush1.bf16.msra.mxu0 0
      %425 = vmatprep.subr.bf16.mxu0 0
      %426 = vmatpush1.bf16.msra.mxu0 0
      %427 = vmatprep.subr.bf16.mxu0 0
      %428 = vmatpush1.bf16.msra.mxu0 0
      %429 = vmatprep.subr.bf16.mxu0 0
      %430 = vmatpush1.bf16.msra.mxu0 0
      %431 = vmatprep.mubr.bf16.mxu0 0
      %432 = vmatmul.mubr.bf16.gmra.mrb[0].mxu0 %v348
      %v433 = vpop.f32.mrb[0].mxu0
      %v434 = vadd.f32 0.0, %v433
      %v435 = vpop.f32.mrb[0].mxu0
      %v436 = vpop.f32.mrb[0].mxu0
      %v437 = vadd.f32 0.0, %v436
      %v438 = vpop.f32.mrb[0].mxu0
      %439 = vmatprep.mubr.bf16.mxu0 0
      %440 = vmatmul.mubr.bf16.gmra.mrb[0].mxu0 %v351
      %v441 = vpop.f32.mrb[0].mxu0
      %v442 = vadd.f32 0.0, %v441
      %v443 = vpop.f32.mrb[0].mxu0
      %v444 = vpop.f32.mrb[0].mxu0
      %v445 = vadd.f32 0.0, %v444
      %v446 = vpop.f32.mrb[0].mxu0
      %447 = vmatprep.mubr.bf16.mxu0 0
      %448 = vmatmul.mubr.bf16.gmra.mrb[0].mxu0 %v354
      %v449 = vpop.f32.mrb[0].mxu0
      %v450 = vadd.f32 0.0, %v449
      %v451 = vpop.f32.mrb[0].mxu0
      %v452 = vpop.f32.mrb[0].mxu0
      %v453 = vadd.f32 0.0, %v452
      %v454 = vpop.f32.mrb[0].mxu0
      %455 = vmatprep.mubr.bf16.mxu0 0
      %456 = vmatmul.mubr.bf16.gmra.mrb[0].mxu0 %v357
      %v457 = vpop.f32.mrb[0].mxu0
      %v458 = vadd.f32 0.0, %v457
      %v459 = vpop.f32.mrb[0].mxu0
      %v460 = vpop.f32.mrb[0].mxu0
      %v461 = vadd.f32 0.0, %v460
      %v462 = vpop.f32.mrb[0].mxu0
      %463 = vmatprep.mubr.bf16.mxu0 0
      %464 = vmatmul.mubr.bf16.gmra.mrb[0].mxu0 %v360
      %v465 = vpop.f32.mrb[0].mxu0
      %v466 = vadd.f32 0.0, %v465
      %v467 = vpop.f32.mrb[0].mxu0
      %v468 = vpop.f32.mrb[0].mxu0
      %v469 = vadd.f32 0.0, %v468
      %v470 = vpop.f32.mrb[0].mxu0
      %471 = vmatprep.mubr.bf16.mxu0 0
      %472 = vmatmul.mubr.bf16.gmra.mrb[0].mxu0 %v363
      %v473 = vpop.f32.mrb[0].mxu0
      %v474 = vadd.f32 0.0, %v473
      %v475 = vpop.f32.mrb[0].mxu0
      %v476 = vpop.f32.mrb[0].mxu0
      %v477 = vadd.f32 0.0, %v476
      %v478 = vpop.f32.mrb[0].mxu0
      %479 = vmatprep.mubr.bf16.mxu0 0
      %480 = vmatmul.mubr.bf16.gmra.mrb[0].mxu0 %v366
      %v481 = vpop.f32.mrb[0].mxu0
      %v482 = vadd.f32 0.0, %v481
      %v483 = vpop.f32.mrb[0].mxu0
      %v484 = vpop.f32.mrb[0].mxu0
      %v485 = vadd.f32 0.0, %v484
      %v486 = vpop.f32.mrb[0].mxu0
      %487 = vmatprep.mubr.bf16.mxu0 0
      %488 = vmatmul.mubr.bf16.gmra.mrb[0].mxu0 %v369
      %v489 = vpop.f32.mrb[0].mxu0
      %v490 = vadd.f32 0.0, %v489
      %v491 = vpop.f32.mrb[0].mxu0
      %v492 = vpop.f32.mrb[0].mxu0
      %v493 = vadd.f32 0.0, %v492
      %v494 = vpop.f32.mrb[0].mxu0
      %495 = vmatprep.mubr.bf16.mxu0 0
      %496 = vmatmul.mubr.bf16.gmra.mrb[0].mxu0 %v372
      %v497 = vpop.f32.mrb[0].mxu0
      %v498 = vadd.f32 0.0, %v497
      %v499 = vpop.f32.mrb[0].mxu0
      %v500 = vpop.f32.mrb[0].mxu0
      %v501 = vadd.f32 0.0, %v500
      %v502 = vpop.f32.mrb[0].mxu0
      %503 = vmatprep.mubr.bf16.mxu0 0
      %504 = vmatmul.mubr.bf16.gmra.mrb[0].mxu0 %v375
      %v505 = vpop.f32.mrb[0].mxu0
      %v506 = vadd.f32 0.0, %v505
      %v507 = vpop.f32.mrb[0].mxu0
      %v508 = vpop.f32.mrb[0].mxu0
      %v509 = vadd.f32 0.0, %v508
      %v510 = vpop.f32.mrb[0].mxu0
      %511 = vmatprep.mubr.bf16.mxu0 0
      %512 = vmatmul.mubr.bf16.gmra.mrb[0].mxu0 %v378
      %v513 = vpop.f32.mrb[0].mxu0
      %v514 = vadd.f32 0.0, %v513
      %v515 = vpop.f32.mrb[0].mxu0
      %v516 = vpop.f32.mrb[0].mxu0
      %v517 = vadd.f32 0.0, %v516
      %v518 = vpop.f32.mrb[0].mxu0
      %519 = vmatprep.mubr.bf16.mxu0 0
      %520 = vmatmul.mubr.bf16.gmra.mrb[0].mxu0 %v381
      %v521 = vpop.f32.mrb[0].mxu0
      %v522 = vadd.f32 0.0, %v521
      %v523 = vpop.f32.mrb[0].mxu0
      %v524 = vpop.f32.mrb[0].mxu0
      %v525 = vadd.f32 0.0, %v524
      %v526 = vpop.f32.mrb[0].mxu0
      %527 = vmatprep.mubr.bf16.mxu0 0
      %528 = vmatmul.mubr.bf16.gmra.mrb[0].mxu0 %v384
      %v529 = vpop.f32.mrb[0].mxu0
      %v530 = vadd.f32 0.0, %v529
      %v531 = vpop.f32.mrb[0].mxu0
      %v532 = vpop.f32.mrb[0].mxu0
      %v533 = vadd.f32 0.0, %v532
      %v534 = vpop.f32.mrb[0].mxu0
      %535 = vmatprep.mubr.bf16.mxu0 0
      %536 = vmatmul.mubr.bf16.gmra.mrb[0].mxu0 %v387
      %v537 = vpop.f32.mrb[0].mxu0
      %v538 = vadd.f32 0.0, %v537
      %v539 = vpop.f32.mrb[0].mxu0
      %v540 = vpop.f32.mrb[0].mxu0
      %v541 = vadd.f32 0.0, %v540
      %v542 = vpop.f32.mrb[0].mxu0
      %543 = vmatprep.mubr.bf16.mxu0 0
      %544 = vmatmul.mubr.bf16.gmra.mrb[0].mxu0 %v390
      %v545 = vpop.f32.mrb[0].mxu0
      %v546 = vadd.f32 0.0, %v545
      %v547 = vpop.f32.mrb[0].mxu0
      %v548 = vpop.f32.mrb[0].mxu0
      %v549 = vadd.f32 0.0, %v548
      %v550 = vpop.f32.mrb[0].mxu0
      %551 = vmatprep.mubr.bf16.mxu0 0
      %552 = vmatmul.mubr.bf16.gmra.mrb[0].mxu0 %v393
      %v553 = vpop.f32.mrb[0].mxu0
      %v554 = vadd.f32 0.0, %v553
      %v555 = vpop.f32.mrb[0].mxu0
      %v556 = vpop.f32.mrb[0].mxu0
      %v557 = vadd.f32 0.0, %v556
      %v558 = vpop.f32.mrb[0].mxu0
      %559 = vdwg.mxu0
      %vm560 = vcmp.ge.f32.partialorder %v434, 0.0
      %vm561 = vcmp.ge.f32.partialorder %v437, 0.0
      %vm562 = vcmp.ge.f32.partialorder %v442, 0.0
      %vm563 = vcmp.ge.f32.partialorder %v445, 0.0
      %vm564 = vcmp.ge.f32.partialorder %v450, 0.0
      %vm565 = vcmp.ge.f32.partialorder %v453, 0.0
      %vm566 = vcmp.ge.f32.partialorder %v458, 0.0
      %vm567 = vcmp.ge.f32.partialorder %v461, 0.0
      %vm568 = vcmp.ge.f32.partialorder %v466, 0.0
      %vm569 = vcmp.ge.f32.partialorder %v469, 0.0
      %vm570 = vcmp.ge.f32.partialorder %v474, 0.0
      %vm571 = vcmp.ge.f32.partialorder %v477, 0.0
      %vm572 = vcmp.ge.f32.partialorder %v482, 0.0
      %vm573 = vcmp.ge.f32.partialorder %v485, 0.0
      %vm574 = vcmp.ge.f32.partialorder %v490, 0.0
      %vm575 = vcmp.ge.f32.partialorder %v493, 0.0
      %vm576 = vcmp.ge.f32.partialorder %v498, 0.0
      %vm577 = vcmp.ge.f32.partialorder %v501, 0.0
      %vm578 = vcmp.ge.f32.partialorder %v506, 0.0
      %vm579 = vcmp.ge.f32.partialorder %v509, 0.0
      %vm580 = vcmp.ge.f32.partialorder %v514, 0.0
      %vm581 = vcmp.ge.f32.partialorder %v517, 0.0
      %vm582 = vcmp.ge.f32.partialorder %v522, 0.0
      %vm583 = vcmp.ge.f32.partialorder %v525, 0.0
      %vm584 = vcmp.ge.f32.partialorder %v530, 0.0
      %vm585 = vcmp.ge.f32.partialorder %v533, 0.0
      %vm586 = vcmp.ge.f32.partialorder %v538, 0.0
      %vm587 = vcmp.ge.f32.partialorder %v541, 0.0
      %vm588 = vcmp.ge.f32.partialorder %v546, 0.0
      %vm589 = vcmp.ge.f32.partialorder %v549, 0.0
      %vm590 = vcmp.ge.f32.partialorder %v554, 0.0
      %vm591 = vcmp.ge.f32.partialorder %v557, 0.0
      %v592 = vmul.f32 %v434, 0.1
      %v593 = vmul.f32 %v437, 0.1
      %v594 = vmul.f32 %v442, 0.1
      %v595 = vmul.f32 %v445, 0.1
      %v596 = vmul.f32 %v450, 0.1
      %v597 = vmul.f32 %v453, 0.1
      %v598 = vmul.f32 %v458, 0.1
      %v599 = vmul.f32 %v461, 0.1
      %v600 = vmul.f32 %v466, 0.1
      %v601 = vmul.f32 %v469, 0.1
      %v602 = vmul.f32 %v474, 0.1
      %v603 = vmul.f32 %v477, 0.1
      %v604 = vmul.f32 %v482, 0.1
      %v605 = vmul.f32 %v485, 0.1
      %v606 = vmul.f32 %v490, 0.1
      %v607 = vmul.f32 %v493, 0.1
      %v608 = vmul.f32 %v498, 0.1
      %v609 = vmul.f32 %v501, 0.1
      %v610 = vmul.f32 %v506, 0.1
      %v611 = vmul.f32 %v509, 0.1
      %v612 = vmul.f32 %v514, 0.1
      %v613 = vmul.f32 %v517, 0.1
      %v614 = vmul.f32 %v522, 0.1
      %v615 = vmul.f32 %v525, 0.1
      %v616 = vmul.f32 %v530, 0.1
      %v617 = vmul.f32 %v533, 0.1
      %v618 = vmul.f32 %v538, 0.1
      %v619 = vmul.f32 %v541, 0.1
      %v620 = vmul.f32 %v546, 0.1
      %v621 = vmul.f32 %v549, 0.1
      %v622 = vmul.f32 %v554, 0.1
      %v623 = vmul.f32 %v557, 0.1
      %v624 = vsel %vm560, %v434, %v592
      %v625 = vsel %vm561, %v437, %v593
      %v626 = vsel %vm562, %v442, %v594
      %v627 = vsel %vm563, %v445, %v595
      %v628 = vsel %vm564, %v450, %v596
      %v629 = vsel %vm565, %v453, %v597
      %v630 = vsel %vm566, %v458, %v598
      %v631 = vsel %vm567, %v461, %v599
      %v632 = vsel %vm568, %v466, %v600
      %v633 = vsel %vm569, %v469, %v601
      %v634 = vsel %vm570, %v474, %v602
      %v635 = vsel %vm571, %v477, %v603
      %v636 = vsel %vm572, %v482, %v604
      %v637 = vsel %vm573, %v485, %v605
      %v638 = vsel %vm574, %v490, %v606
      %v639 = vsel %vm575, %v493, %v607
      %v640 = vsel %vm576, %v498, %v608
      %v641 = vsel %vm577, %v501, %v609
      %v642 = vsel %vm578, %v506, %v610
      %v643 = vsel %vm579, %v509, %v611
      %v644 = vsel %vm580, %v514, %v612
      %v645 = vsel %vm581, %v517, %v613
      %v646 = vsel %vm582, %v522, %v614
      %v647 = vsel %vm583, %v525, %v615
      %v648 = vsel %vm584, %v530, %v616
      %v649 = vsel %vm585, %v533, %v617
      %v650 = vsel %vm586, %v538, %v618
      %v651 = vsel %vm587, %v541, %v619
      %v652 = vsel %vm588, %v546, %v620
      %v653 = vsel %vm589, %v549, %v621
      %v654 = vsel %vm590, %v554, %v622
      %v655 = vsel %vm591, %v557, %v623
      %v656 = vlaneseq
      %v657 = vshrl.u32 %v656, 7
      %v658 = vadd.s32 %v657, 8
      %v659 = vadd.s32 %v657, 16
      %v660 = vadd.s32 %v657, 24
      %v661 = vadd.s32 %v657, 32
      %v662 = vadd.s32 %v657, 40
      %v663 = vadd.s32 %v657, 48
      %v664 = vadd.s32 %v657, 56
      %v665 = vadd.s32 %v657, 64
      %v666 = vadd.s32 %v657, 72
      %v667 = vadd.s32 %v657, 80
      %v668 = vadd.s32 %v657, 88
      %v669 = vadd.s32 %v657, 96
      %v670 = vadd.s32 %v657, 104
      %v671 = vadd.s32 %v657, 112
      %v672 = vadd.s32 %v657, 120
      %v673 = vadd.s32 %v657, 128
      %v674 = vadd.s32 %v657, 136
      %v675 = vadd.s32 %v657, 144
      %v676 = vadd.s32 %v657, 152
      %v677 = vadd.s32 %v657, 160
      %v678 = vadd.s32 %v657, 168
      %v679 = vadd.s32 %v657, 176
      %v680 = vadd.s32 %v657, 184
      %v681 = vadd.s32 %v657, 192
      %v682 = vadd.s32 %v657, 200
      %v683 = vadd.s32 %v657, 208
      %v684 = vadd.s32 %v657, 216
      %v685 = vadd.s32 %v657, 224
      %v686 = vadd.s32 %v657, 232
      %v687 = vadd.s32 %v657, 240
      %v688 = vadd.s32 %v657, 248
      %s689 = smul.u32 %s17, 256
      %v690 = vstv %s689
      %v691 = vadd.s32 %v657, %v690
      %v692 = vadd.s32 %v658, %v690
      %v693 = vadd.s32 %v659, %v690
      %v694 = vadd.s32 %v660, %v690
      %v695 = vadd.s32 %v661, %v690
      %v696 = vadd.s32 %v662, %v690
      %v697 = vadd.s32 %v663, %v690
      %v698 = vadd.s32 %v664, %v690
      %v699 = vadd.s32 %v665, %v690
      %v700 = vadd.s32 %v666, %v690
      %v701 = vadd.s32 %v667, %v690
      %v702 = vadd.s32 %v668, %v690
      %v703 = vadd.s32 %v669, %v690
      %v704 = vadd.s32 %v670, %v690
      %v705 = vadd.s32 %v671, %v690
      %v706 = vadd.s32 %v672, %v690
      %v707 = vadd.s32 %v673, %v690
      %v708 = vadd.s32 %v674, %v690
      %v709 = vadd.s32 %v675, %v690
      %v710 = vadd.s32 %v676, %v690
      %v711 = vadd.s32 %v677, %v690
      %v712 = vadd.s32 %v678, %v690
      %v713 = vadd.s32 %v679, %v690
      %v714 = vadd.s32 %v680, %v690
      %v715 = vadd.s32 %v681, %v690
      %v716 = vadd.s32 %v682, %v690
      %v717 = vadd.s32 %v683, %v690
      %v718 = vadd.s32 %v684, %v690
      %v719 = vadd.s32 %v685, %v690
      %v720 = vadd.s32 %v686, %v690
      %v721 = vadd.s32 %v687, %v690
      %v722 = vadd.s32 %v688, %v690
      %v723 = vlaneseq
      %v724 = vand.u32 %v723, 127
      %v725 = vmul.u32 %v691, 65599
      %v726 = vmul.u32 %v692, 65599
      %v727 = vmul.u32 %v693, 65599
      %v728 = vmul.u32 %v694, 65599
      %v729 = vmul.u32 %v695, 65599
      %v730 = vmul.u32 %v696, 65599
      %v731 = vmul.u32 %v697, 65599
      %v732 = vmul.u32 %v698, 65599
      %v733 = vmul.u32 %v699, 65599
      %v734 = vmul.u32 %v700, 65599
      %v735 = vmul.u32 %v701, 65599
      %v736 = vmul.u32 %v702, 65599
      %v737 = vmul.u32 %v703, 65599
      %v738 = vmul.u32 %v704, 65599
      %v739 = vmul.u32 %v705, 65599
      %v740 = vmul.u32 %v706, 65599
      %v741 = vmul.u32 %v707, 65599
      %v742 = vmul.u32 %v708, 65599
      %v743 = vmul.u32 %v709, 65599
      %v744 = vmul.u32 %v710, 65599
      %v745 = vmul.u32 %v711, 65599
      %v746 = vmul.u32 %v712, 65599
      %v747 = vmul.u32 %v713, 65599
      %v748 = vmul.u32 %v714, 65599
      %v749 = vmul.u32 %v715, 65599
      %v750 = vmul.u32 %v716, 65599
      %v751 = vmul.u32 %v717, 65599
      %v752 = vmul.u32 %v718, 65599
      %v753 = vmul.u32 %v719, 65599
      %v754 = vmul.u32 %v720, 65599
      %v755 = vmul.u32 %v721, 65599
      %v756 = vmul.u32 %v722, 65599
      %v757 = vadd.s32 %v725, %v724
      %v758 = vadd.s32 %v726, %v724
      %v759 = vadd.s32 %v727, %v724
      %v760 = vadd.s32 %v728, %v724
      %v761 = vadd.s32 %v729, %v724
      %v762 = vadd.s32 %v730, %v724
      %v763 = vadd.s32 %v731, %v724
      %v764 = vadd.s32 %v732, %v724
      %v765 = vadd.s32 %v733, %v724
      %v766 = vadd.s32 %v734, %v724
      %v767 = vadd.s32 %v735, %v724
      %v768 = vadd.s32 %v736, %v724
      %v769 = vadd.s32 %v737, %v724
      %v770 = vadd.s32 %v738, %v724
      %v771 = vadd.s32 %v739, %v724
      %v772 = vadd.s32 %v740, %v724
      %v773 = vadd.s32 %v741, %v724
      %v774 = vadd.s32 %v742, %v724
      %v775 = vadd.s32 %v743, %v724
      %v776 = vadd.s32 %v744, %v724
      %v777 = vadd.s32 %v745, %v724
      %v778 = vadd.s32 %v746, %v724
      %v779 = vadd.s32 %v747, %v724
      %v780 = vadd.s32 %v748, %v724
      %v781 = vadd.s32 %v749, %v724
      %v782 = vadd.s32 %v750, %v724
      %v783 = vadd.s32 %v751, %v724
      %v784 = vadd.s32 %v752, %v724
      %v785 = vadd.s32 %v753, %v724
      %v786 = vadd.s32 %v754, %v724
      %v787 = vadd.s32 %v755, %v724
      %v788 = vadd.s32 %v756, %v724
      %s789 = sld [smem:[#allocation2]]
      %s790 = smul.u32 %s789, 73244475
      %s791 = sadd.s32 %s790, 1243861
      %v792 = vstv %s791
      %v793 = vxor.u32 %v757, %v792
      %v794 = vxor.u32 %v758, %v792
      %v795 = vxor.u32 %v759, %v792
      %v796 = vxor.u32 %v760, %v792
      %v797 = vxor.u32 %v761, %v792
      %v798 = vxor.u32 %v762, %v792
      %v799 = vxor.u32 %v763, %v792
      %v800 = vxor.u32 %v764, %v792
      %v801 = vxor.u32 %v765, %v792
      %v802 = vxor.u32 %v766, %v792
      %v803 = vxor.u32 %v767, %v792
      %v804 = vxor.u32 %v768, %v792
      %v805 = vxor.u32 %v769, %v792
      %v806 = vxor.u32 %v770, %v792
      %v807 = vxor.u32 %v771, %v792
      %v808 = vxor.u32 %v772, %v792
      %v809 = vxor.u32 %v773, %v792
      %v810 = vxor.u32 %v774, %v792
      %v811 = vxor.u32 %v775, %v792
      %v812 = vxor.u32 %v776, %v792
      %v813 = vxor.u32 %v777, %v792
      %v814 = vxor.u32 %v778, %v792
      %v815 = vxor.u32 %v779, %v792
      %v816 = vxor.u32 %v780, %v792
      %v817 = vxor.u32 %v781, %v792
      %v818 = vxor.u32 %v782, %v792
      %v819 = vxor.u32 %v783, %v792
      %v820 = vxor.u32 %v784, %v792
      %v821 = vxor.u32 %v785, %v792
      %v822 = vxor.u32 %v786, %v792
      %v823 = vxor.u32 %v787, %v792
      %v824 = vxor.u32 %v788, %v792
      %v825 = vshra.s32 %v793, 16
      %v826 = vshra.s32 %v794, 16
      %v827 = vshra.s32 %v795, 16
      %v828 = vshra.s32 %v796, 16
      %v829 = vshra.s32 %v797, 16
      %v830 = vshra.s32 %v798, 16
      %v831 = vshra.s32 %v799, 16
      %v832 = vshra.s32 %v800, 16
      %v833 = vshra.s32 %v801, 16
      %v834 = vshra.s32 %v802, 16
      %v835 = vshra.s32 %v803, 16
      %v836 = vshra.s32 %v804, 16
      %v837 = vshra.s32 %v805, 16
      %v838 = vshra.s32 %v806, 16
      %v839 = vshra.s32 %v807, 16
      %v840 = vshra.s32 %v808, 16
      %v841 = vshra.s32 %v809, 16
      %v842 = vshra.s32 %v810, 16
      %v843 = vshra.s32 %v811, 16
      %v844 = vshra.s32 %v812, 16
      %v845 = vshra.s32 %v813, 16
      %v846 = vshra.s32 %v814, 16
      %v847 = vshra.s32 %v815, 16
      %v848 = vshra.s32 %v816, 16
      %v849 = vshra.s32 %v817, 16
      %v850 = vshra.s32 %v818, 16
      %v851 = vshra.s32 %v819, 16
      %v852 = vshra.s32 %v820, 16
      %v853 = vshra.s32 %v821, 16
      %v854 = vshra.s32 %v822, 16
      %v855 = vshra.s32 %v823, 16
      %v856 = vshra.s32 %v824, 16
      %v857 = vxor.u32 %v793, %v825
      %v858 = vxor.u32 %v794, %v826
      %v859 = vxor.u32 %v795, %v827
      %v860 = vxor.u32 %v796, %v828
      %v861 = vxor.u32 %v797, %v829
      %v862 = vxor.u32 %v798, %v830
      %v863 = vxor.u32 %v799, %v831
      %v864 = vxor.u32 %v800, %v832
      %v865 = vxor.u32 %v801, %v833
      %v866 = vxor.u32 %v802, %v834
      %v867 = vxor.u32 %v803, %v835
      %v868 = vxor.u32 %v804, %v836
      %v869 = vxor.u32 %v805, %v837
      %v870 = vxor.u32 %v806, %v838
      %v871 = vxor.u32 %v807, %v839
      %v872 = vxor.u32 %v808, %v840
      %v873 = vxor.u32 %v809, %v841
      %v874 = vxor.u32 %v810, %v842
      %v875 = vxor.u32 %v811, %v843
      %v876 = vxor.u32 %v812, %v844
      %v877 = vxor.u32 %v813, %v845
      %v878 = vxor.u32 %v814, %v846
      %v879 = vxor.u32 %v815, %v847
      %v880 = vxor.u32 %v816, %v848
      %v881 = vxor.u32 %v817, %v849
      %v882 = vxor.u32 %v818, %v850
      %v883 = vxor.u32 %v819, %v851
      %v884 = vxor.u32 %v820, %v852
      %v885 = vxor.u32 %v821, %v853
      %v886 = vxor.u32 %v822, %v854
      %v887 = vxor.u32 %v823, %v855
      %v888 = vxor.u32 %v824, %v856
      %v889 = vmul.u32 %v857, 73244475
      %v890 = vmul.u32 %v858, 73244475
      %v891 = vmul.u32 %v859, 73244475
      %v892 = vmul.u32 %v860, 73244475
      %v893 = vmul.u32 %v861, 73244475
      %v894 = vmul.u32 %v862, 73244475
      %v895 = vmul.u32 %v863, 73244475
      %v896 = vmul.u32 %v864, 73244475
      %v897 = vmul.u32 %v865, 73244475
      %v898 = vmul.u32 %v866, 73244475
      %v899 = vmul.u32 %v867, 73244475
      %v900 = vmul.u32 %v868, 73244475
      %v901 = vmul.u32 %v869, 73244475
      %v902 = vmul.u32 %v870, 73244475
      %v903 = vmul.u32 %v871, 73244475
      %v904 = vmul.u32 %v872, 73244475
      %v905 = vmul.u32 %v873, 73244475
      %v906 = vmul.u32 %v874, 73244475
      %v907 = vmul.u32 %v875, 73244475
      %v908 = vmul.u32 %v876, 73244475
      %v909 = vmul.u32 %v877, 73244475
      %v910 = vmul.u32 %v878, 73244475
      %v911 = vmul.u32 %v879, 73244475
      %v912 = vmul.u32 %v880, 73244475
      %v913 = vmul.u32 %v881, 73244475
      %v914 = vmul.u32 %v882, 73244475
      %v915 = vmul.u32 %v883, 73244475
      %v916 = vmul.u32 %v884, 73244475
      %v917 = vmul.u32 %v885, 73244475
      %v918 = vmul.u32 %v886, 73244475
      %v919 = vmul.u32 %v887, 73244475
      %v920 = vmul.u32 %v888, 73244475
      %v921 = vshra.s32 %v889, 13
      %v922 = vshra.s32 %v890, 13
      %v923 = vshra.s32 %v891, 13
      %v924 = vshra.s32 %v892, 13
      %v925 = vshra.s32 %v893, 13
      %v926 = vshra.s32 %v894, 13
      %v927 = vshra.s32 %v895, 13
      %v928 = vshra.s32 %v896, 13
      %v929 = vshra.s32 %v897, 13
      %v930 = vshra.s32 %v898, 13
      %v931 = vshra.s32 %v899, 13
      %v932 = vshra.s32 %v900, 13
      %v933 = vshra.s32 %v901, 13
      %v934 = vshra.s32 %v902, 13
      %v935 = vshra.s32 %v903, 13
      %v936 = vshra.s32 %v904, 13
      %v937 = vshra.s32 %v905, 13
      %v938 = vshra.s32 %v906, 13
      %v939 = vshra.s32 %v907, 13
      %v940 = vshra.s32 %v908, 13
      %v941 = vshra.s32 %v909, 13
      %v942 = vshra.s32 %v910, 13
      %v943 = vshra.s32 %v911, 13
      %v944 = vshra.s32 %v912, 13
      %v945 = vshra.s32 %v913, 13
      %v946 = vshra.s32 %v914, 13
      %v947 = vshra.s32 %v915, 13
      %v948 = vshra.s32 %v916, 13
      %v949 = vshra.s32 %v917, 13
      %v950 = vshra.s32 %v918, 13
      %v951 = vshra.s32 %v919, 13
      %v952 = vshra.s32 %v920, 13
      %v953 = vxor.u32 %v889, %v921
      %v954 = vxor.u32 %v890, %v922
      %v955 = vxor.u32 %v891, %v923
      %v956 = vxor.u32 %v892, %v924
      %v957 = vxor.u32 %v893, %v925
      %v958 = vxor.u32 %v894, %v926
      %v959 = vxor.u32 %v895, %v927
      %v960 = vxor.u32 %v896, %v928
      %v961 = vxor.u32 %v897, %v929
      %v962 = vxor.u32 %v898, %v930
      %v963 = vxor.u32 %v899, %v931
      %v964 = vxor.u32 %v900, %v932
      %v965 = vxor.u32 %v901, %v933
      %v966 = vxor.u32 %v902, %v934
      %v967 = vxor.u32 %v903, %v935
      %v968 = vxor.u32 %v904, %v936
      %v969 = vxor.u32 %v905, %v937
      %v970 = vxor.u32 %v906, %v938
      %v971 = vxor.u32 %v907, %v939
      %v972 = vxor.u32 %v908, %v940
      %v973 = vxor.u32 %v909, %v941
      %v974 = vxor.u32 %v910, %v942
      %v975 = vxor.u32 %v911, %v943
      %v976 = vxor.u32 %v912, %v944
      %v977 = vxor.u32 %v913, %v945
      %v978 = vxor.u32 %v914, %v946
      %v979 = vxor.u32 %v915, %v947
      %v980 = vxor.u32 %v916, %v948
      %v981 = vxor.u32 %v917, %v949
      %v982 = vxor.u32 %v918, %v950
      %v983 = vxor.u32 %v919, %v951
      %v984 = vxor.u32 %v920, %v952
      %v985 = vmul.u32 %v953, 73244475
      %v986 = vmul.u32 %v954, 73244475
      %v987 = vmul.u32 %v955, 73244475
      %v988 = vmul.u32 %v956, 73244475
      %v989 = vmul.u32 %v957, 73244475
      %v990 = vmul.u32 %v958, 73244475
      %v991 = vmul.u32 %v959, 73244475
      %v992 = vmul.u32 %v960, 73244475
      %v993 = vmul.u32 %v961, 73244475
      %v994 = vmul.u32 %v962, 73244475
      %v995 = vmul.u32 %v963, 73244475
      %v996 = vmul.u32 %v964, 73244475
      %v997 = vmul.u32 %v965, 73244475
      %v998 = vmul.u32 %v966, 73244475
      %v999 = vmul.u32 %v967, 73244475
      %v1000 = vmul.u32 %v968, 73244475
      %v1001 = vmul.u32 %v969, 73244475
      %v1002 = vmul.u32 %v970, 73244475
      %v1003 = vmul.u32 %v971, 73244475
      %v1004 = vmul.u32 %v972, 73244475
      %v1005 = vmul.u32 %v973, 73244475
      %v1006 = vmul.u32 %v974, 73244475
      %v1007 = vmul.u32 %v975, 73244475
      %v1008 = vmul.u32 %v976, 73244475
      %v1009 = vmul.u32 %v977, 73244475
      %v1010 = vmul.u32 %v978, 73244475
      %v1011 = vmul.u32 %v979, 73244475
      %v1012 = vmul.u32 %v980, 73244475
      %v1013 = vmul.u32 %v981, 73244475
      %v1014 = vmul.u32 %v982, 73244475
      %v1015 = vmul.u32 %v983, 73244475
      %v1016 = vmul.u32 %v984, 73244475
      %v1017 = vshra.s32 %v985, 16
      %v1018 = vshra.s32 %v986, 16
      %v1019 = vshra.s32 %v987, 16
      %v1020 = vshra.s32 %v988, 16
      %v1021 = vshra.s32 %v989, 16
      %v1022 = vshra.s32 %v990, 16
      %v1023 = vshra.s32 %v991, 16
      %v1024 = vshra.s32 %v992, 16
      %v1025 = vshra.s32 %v993, 16
      %v1026 = vshra.s32 %v994, 16
      %v1027 = vshra.s32 %v995, 16
      %v1028 = vshra.s32 %v996, 16
      %v1029 = vshra.s32 %v997, 16
      %v1030 = vshra.s32 %v998, 16
      %v1031 = vshra.s32 %v999, 16
      %v1032 = vshra.s32 %v1000, 16
      %v1033 = vshra.s32 %v1001, 16
      %v1034 = vshra.s32 %v1002, 16
      %v1035 = vshra.s32 %v1003, 16
      %v1036 = vshra.s32 %v1004, 16
      %v1037 = vshra.s32 %v1005, 16
      %v1038 = vshra.s32 %v1006, 16
      %v1039 = vshra.s32 %v1007, 16
      %v1040 = vshra.s32 %v1008, 16
      %v1041 = vshra.s32 %v1009, 16
      %v1042 = vshra.s32 %v1010, 16
      %v1043 = vshra.s32 %v1011, 16
      %v1044 = vshra.s32 %v1012, 16
      %v1045 = vshra.s32 %v1013, 16
      %v1046 = vshra.s32 %v1014, 16
      %v1047 = vshra.s32 %v1015, 16
      %v1048 = vshra.s32 %v1016, 16
      %v1049 = vxor.u32 %v985, %v1017
      %v1050 = vxor.u32 %v986, %v1018
      %v1051 = vxor.u32 %v987, %v1019
      %v1052 = vxor.u32 %v988, %v1020
      %v1053 = vxor.u32 %v989, %v1021
      %v1054 = vxor.u32 %v990, %v1022
      %v1055 = vxor.u32 %v991, %v1023
      %v1056 = vxor.u32 %v992, %v1024
      %v1057 = vxor.u32 %v993, %v1025
      %v1058 = vxor.u32 %v994, %v1026
      %v1059 = vxor.u32 %v995, %v1027
      %v1060 = vxor.u32 %v996, %v1028
      %v1061 = vxor.u32 %v997, %v1029
      %v1062 = vxor.u32 %v998, %v1030
      %v1063 = vxor.u32 %v999, %v1031
      %v1064 = vxor.u32 %v1000, %v1032
      %v1065 = vxor.u32 %v1001, %v1033
      %v1066 = vxor.u32 %v1002, %v1034
      %v1067 = vxor.u32 %v1003, %v1035
      %v1068 = vxor.u32 %v1004, %v1036
      %v1069 = vxor.u32 %v1005, %v1037
      %v1070 = vxor.u32 %v1006, %v1038
      %v1071 = vxor.u32 %v1007, %v1039
      %v1072 = vxor.u32 %v1008, %v1040
      %v1073 = vxor.u32 %v1009, %v1041
      %v1074 = vxor.u32 %v1010, %v1042
      %v1075 = vxor.u32 %v1011, %v1043
      %v1076 = vxor.u32 %v1012, %v1044
      %v1077 = vxor.u32 %v1013, %v1045
      %v1078 = vxor.u32 %v1014, %v1046
      %v1079 = vxor.u32 %v1015, %v1047
      %v1080 = vxor.u32 %v1016, %v1048
      %v1081 = vand.u32 %v1049, 16777215
      %v1082 = vand.u32 %v1050, 16777215
      %v1083 = vand.u32 %v1051, 16777215
      %v1084 = vand.u32 %v1052, 16777215
      %v1085 = vand.u32 %v1053, 16777215
      %v1086 = vand.u32 %v1054, 16777215
      %v1087 = vand.u32 %v1055, 16777215
      %v1088 = vand.u32 %v1056, 16777215
      %v1089 = vand.u32 %v1057, 16777215
      %v1090 = vand.u32 %v1058, 16777215
      %v1091 = vand.u32 %v1059, 16777215
      %v1092 = vand.u32 %v1060, 16777215
      %v1093 = vand.u32 %v1061, 16777215
      %v1094 = vand.u32 %v1062, 16777215
      %v1095 = vand.u32 %v1063, 16777215
      %v1096 = vand.u32 %v1064, 16777215
      %v1097 = vand.u32 %v1065, 16777215
      %v1098 = vand.u32 %v1066, 16777215
      %v1099 = vand.u32 %v1067, 16777215
      %v1100 = vand.u32 %v1068, 16777215
      %v1101 = vand.u32 %v1069, 16777215
      %v1102 = vand.u32 %v1070, 16777215
      %v1103 = vand.u32 %v1071, 16777215
      %v1104 = vand.u32 %v1072, 16777215
      %v1105 = vand.u32 %v1073, 16777215
      %v1106 = vand.u32 %v1074, 16777215
      %v1107 = vand.u32 %v1075, 16777215
      %v1108 = vand.u32 %v1076, 16777215
      %v1109 = vand.u32 %v1077, 16777215
      %v1110 = vand.u32 %v1078, 16777215
      %v1111 = vand.u32 %v1079, 16777215
      %v1112 = vand.u32 %v1080, 16777215
      %vm1113 = vcmp.ge.s32.totalorder %v1081, 3355443
      %vm1114 = vcmp.ge.s32.totalorder %v1082, 3355443
      %vm1115 = vcmp.ge.s32.totalorder %v1083, 3355443
      %vm1116 = vcmp.ge.s32.totalorder %v1084, 3355443
      %vm1117 = vcmp.ge.s32.totalorder %v1085, 3355443
      %vm1118 = vcmp.ge.s32.totalorder %v1086, 3355443
      %vm1119 = vcmp.ge.s32.totalorder %v1087, 3355443
      %vm1120 = vcmp.ge.s32.totalorder %v1088, 3355443
      %vm1121 = vcmp.ge.s32.totalorder %v1089, 3355443
      %vm1122 = vcmp.ge.s32.totalorder %v1090, 3355443
      %vm1123 = vcmp.ge.s32.totalorder %v1091, 3355443
      %vm1124 = vcmp.ge.s32.totalorder %v1092, 3355443
      %vm1125 = vcmp.ge.s32.totalorder %v1093, 3355443
      %vm1126 = vcmp.ge.s32.totalorder %v1094, 3355443
      %vm1127 = vcmp.ge.s32.totalorder %v1095, 3355443
      %vm1128 = vcmp.ge.s32.totalorder %v1096, 3355443
      %vm1129 = vcmp.ge.s32.totalorder %v1097, 3355443
      %vm1130 = vcmp.ge.s32.totalorder %v1098, 3355443
      %vm1131 = vcmp.ge.s32.totalorder %v1099, 3355443
      %vm1132 = vcmp.ge.s32.totalorder %v1100, 3355443
      %vm1133 = vcmp.ge.s32.totalorder %v1101, 3355443
      %vm1134 = vcmp.ge.s32.totalorder %v1102, 3355443
      %vm1135 = vcmp.ge.s32.totalorder %v1103, 3355443
      %vm1136 = vcmp.ge.s32.totalorder %v1104, 3355443
      %vm1137 = vcmp.ge.s32.totalorder %v1105, 3355443
      %vm1138 = vcmp.ge.s32.totalorder %v1106, 3355443
      %vm1139 = vcmp.ge.s32.totalorder %v1107, 3355443
      %vm1140 = vcmp.ge.s32.totalorder %v1108, 3355443
      %vm1141 = vcmp.ge.s32.totalorder %v1109, 3355443
      %vm1142 = vcmp.ge.s32.totalorder %v1110, 3355443
      %vm1143 = vcmp.ge.s32.totalorder %v1111, 3355443
      %vm1144 = vcmp.ge.s32.totalorder %v1112, 3355443
      %v1145 = vsel %vm1113, %v624, 0.0
      %v1146 = vsel %vm1114, %v625, 0.0
      %v1147 = vsel %vm1115, %v626, 0.0
      %v1148 = vsel %vm1116, %v627, 0.0
      %v1149 = vsel %vm1117, %v628, 0.0
      %v1150 = vsel %vm1118, %v629, 0.0
      %v1151 = vsel %vm1119, %v630, 0.0
      %v1152 = vsel %vm1120, %v631, 0.0
      %v1153 = vsel %vm1121, %v632, 0.0
      %v1154 = vsel %vm1122, %v633, 0.0
      %v1155 = vsel %vm1123, %v634, 0.0
      %v1156 = vsel %vm1124, %v635, 0.0
      %v1157 = vsel %vm1125, %v636, 0.0
      %v1158 = vsel %vm1126, %v637, 0.0
      %v1159 = vsel %vm1127, %v638, 0.0
      %v1160 = vsel %vm1128, %v639, 0.0
      %v1161 = vsel %vm1129, %v640, 0.0
      %v1162 = vsel %vm1130, %v641, 0.0
      %v1163 = vsel %vm1131, %v642, 0.0
      %v1164 = vsel %vm1132, %v643, 0.0
      %v1165 = vsel %vm1133, %v644, 0.0
      %v1166 = vsel %vm1134, %v645, 0.0
      %v1167 = vsel %vm1135, %v646, 0.0
      %v1168 = vsel %vm1136, %v647, 0.0
      %v1169 = vsel %vm1137, %v648, 0.0
      %v1170 = vsel %vm1138, %v649, 0.0
      %v1171 = vsel %vm1139, %v650, 0.0
      %v1172 = vsel %vm1140, %v651, 0.0
      %v1173 = vsel %vm1141, %v652, 0.0
      %v1174 = vsel %vm1142, %v653, 0.0
      %v1175 = vsel %vm1143, %v654, 0.0
      %v1176 = vsel %vm1144, %v655, 0.0
      %1177 = vst [vmem:[%s207] sm:$0xff] %v1145
      %1178 = vst [vmem:[%s207 + $0x8] sm:$0xff] %v1146
      %1179 = vst [vmem:[%s207 + $0x10] sm:$0xff] %v1147
      %1180 = vst [vmem:[%s207 + $0x18] sm:$0xff] %v1148
      %1181 = vst [vmem:[%s207 + $0x20] sm:$0xff] %v1149
      %1182 = vst [vmem:[%s207 + $0x28] sm:$0xff] %v1150
      %1183 = vst [vmem:[%s207 + $0x30] sm:$0xff] %v1151
      %1184 = vst [vmem:[%s207 + $0x38] sm:$0xff] %v1152
      %1185 = vst [vmem:[%s207 + $0x40] sm:$0xff] %v1153
      %1186 = vst [vmem:[%s207 + $0x48] sm:$0xff] %v1154
      %1187 = vst [vmem:[%s207 + $0x50] sm:$0xff] %v1155
      %1188 = vst [vmem:[%s207 + $0x58] sm:$0xff] %v1156
      %1189 = vst [vmem:[%s207 + $0x60] sm:$0xff] %v1157
      %1190 = vst [vmem:[%s207 + $0x68] sm:$0xff] %v1158
      %1191 = vst [vmem:[%s207 + $0x70] sm:$0xff] %v1159
      %1192 = vst [vmem:[%s207 + $0x78] sm:$0xff] %v1160
      %1193 = vst [vmem:[%s207 + $0x80] sm:$0xff] %v1161
      %1194 = vst [vmem:[%s207 + $0x88] sm:$0xff] %v1162
      %1195 = vst [vmem:[%s207 + $0x90] sm:$0xff] %v1163
      %1196 = vst [vmem:[%s207 + $0x98] sm:$0xff] %v1164
      %1197 = vst [vmem:[%s207 + $0xa0] sm:$0xff] %v1165
      %1198 = vst [vmem:[%s207 + $0xa8] sm:$0xff] %v1166
      %1199 = vst [vmem:[%s207 + $0xb0] sm:$0xff] %v1167
      %1200 = vst [vmem:[%s207 + $0xb8] sm:$0xff] %v1168
      %1201 = vst [vmem:[%s207 + $0xc0] sm:$0xff] %v1169
      %1202 = vst [vmem:[%s207 + $0xc8] sm:$0xff] %v1170
      %1203 = vst [vmem:[%s207 + $0xd0] sm:$0xff] %v1171
      %1204 = vst [vmem:[%s207 + $0xd8] sm:$0xff] %v1172
      %1205 = vst [vmem:[%s207 + $0xe0] sm:$0xff] %v1173
      %1206 = vst [vmem:[%s207 + $0xe8] sm:$0xff] %v1174
      %1207 = vst [vmem:[%s207 + $0xf0] sm:$0xff] %v1175
      %1208 = vst [vmem:[%s207 + $0xf8] sm:$0xff] %v1176
      %v1209 = vadd.f32 %v1145, %v1146
      %v1210 = vadd.f32 %v1209, %v1147
      %v1211 = vadd.f32 %v1210, %v1148
      %v1212 = vadd.f32 %v1211, %v1149
      %v1213 = vadd.f32 %v1212, %v1150
      %v1214 = vadd.f32 %v1213, %v1151
      %v1215 = vadd.f32 %v1214, %v1152
      %v1216 = vadd.f32 %v1215, %v1153
      %v1217 = vadd.f32 %v1216, %v1154
      %v1218 = vadd.f32 %v1217, %v1155
      %v1219 = vadd.f32 %v1218, %v1156
      %v1220 = vadd.f32 %v1219, %v1157
      %v1221 = vadd.f32 %v1220, %v1158
      %v1222 = vadd.f32 %v1221, %v1159
      %v1223 = vadd.f32 %v1222, %v1160
      %v1224 = vadd.f32 %v1223, %v1161
      %v1225 = vadd.f32 %v1224, %v1162
      %v1226 = vadd.f32 %v1225, %v1163
      %v1227 = vadd.f32 %v1226, %v1164
      %v1228 = vadd.f32 %v1227, %v1165
      %v1229 = vadd.f32 %v1228, %v1166
      %v1230 = vadd.f32 %v1229, %v1167
      %v1231 = vadd.f32 %v1230, %v1168
      %v1232 = vadd.f32 %v1231, %v1169
      %v1233 = vadd.f32 %v1232, %v1170
      %v1234 = vadd.f32 %v1233, %v1171
      %v1235 = vadd.f32 %v1234, %v1172
      %v1236 = vadd.f32 %v1235, %v1173
      %v1237 = vadd.f32 %v1236, %v1174
      %v1238 = vadd.f32 %v1237, %v1175
      %v1239 = vadd.f32 %v1238, %v1176
      %v1240 = vrot.slane %v1239, 4
      %v1241 = vadd.f32 %v1239, %v1240
      %v1242 = vrot.slane %v1241, 2
      %v1243 = vadd.f32 %v1241, %v1242
      %v1244 = vrot.slane %v1243, 1
      %v1245 = vadd.f32 %v1243, %v1244
      %v1246 = vmul.f32 %v1145, %v1145
      %v1247 = vmul.f32 %v1146, %v1146
      %v1248 = vmul.f32 %v1147, %v1147
      %v1249 = vmul.f32 %v1148, %v1148
      %v1250 = vmul.f32 %v1149, %v1149
      %v1251 = vmul.f32 %v1150, %v1150
      %v1252 = vmul.f32 %v1151, %v1151
      %v1253 = vmul.f32 %v1152, %v1152
      %v1254 = vmul.f32 %v1153, %v1153
      %v1255 = vmul.f32 %v1154, %v1154
      %v1256 = vmul.f32 %v1155, %v1155
      %v1257 = vmul.f32 %v1156, %v1156
      %v1258 = vmul.f32 %v1157, %v1157
      %v1259 = vmul.f32 %v1158, %v1158
      %v1260 = vmul.f32 %v1159, %v1159
      %v1261 = vmul.f32 %v1160, %v1160
      %v1262 = vmul.f32 %v1161, %v1161
      %v1263 = vmul.f32 %v1162, %v1162
      %v1264 = vmul.f32 %v1163, %v1163
      %v1265 = vmul.f32 %v1164, %v1164
      %v1266 = vmul.f32 %v1165, %v1165
      %v1267 = vmul.f32 %v1166, %v1166
      %v1268 = vmul.f32 %v1167, %v1167
      %v1269 = vmul.f32 %v1168, %v1168
      %v1270 = vmul.f32 %v1169, %v1169
      %v1271 = vmul.f32 %v1170, %v1170
      %v1272 = vmul.f32 %v1171, %v1171
      %v1273 = vmul.f32 %v1172, %v1172
      %v1274 = vmul.f32 %v1173, %v1173
      %v1275 = vmul.f32 %v1174, %v1174
      %v1276 = vmul.f32 %v1175, %v1175
      %v1277 = vmul.f32 %v1176, %v1176
      %v1278 = vadd.f32 %v1246, %v1247
      %v1279 = vadd.f32 %v1278, %v1248
      %v1280 = vadd.f32 %v1279, %v1249
      %v1281 = vadd.f32 %v1280, %v1250
      %v1282 = vadd.f32 %v1281, %v1251
      %v1283 = vadd.f32 %v1282, %v1252
      %v1284 = vadd.f32 %v1283, %v1253
      %v1285 = vadd.f32 %v1284, %v1254
      %v1286 = vadd.f32 %v1285, %v1255
      %v1287 = vadd.f32 %v1286, %v1256
      %v1288 = vadd.f32 %v1287, %v1257
      %v1289 = vadd.f32 %v1288, %v1258
      %v1290 = vadd.f32 %v1289, %v1259
      %v1291 = vadd.f32 %v1290, %v1260
      %v1292 = vadd.f32 %v1291, %v1261
      %v1293 = vadd.f32 %v1292, %v1262
      %v1294 = vadd.f32 %v1293, %v1263
      %v1295 = vadd.f32 %v1294, %v1264
      %v1296 = vadd.f32 %v1295, %v1265
      %v1297 = vadd.f32 %v1296, %v1266
      %v1298 = vadd.f32 %v1297, %v1267
      %v1299 = vadd.f32 %v1298, %v1268
      %v1300 = vadd.f32 %v1299, %v1269
      %v1301 = vadd.f32 %v1300, %v1270
      %v1302 = vadd.f32 %v1301, %v1271
      %v1303 = vadd.f32 %v1302, %v1272
      %v1304 = vadd.f32 %v1303, %v1273
      %v1305 = vadd.f32 %v1304, %v1274
      %v1306 = vadd.f32 %v1305, %v1275
      %v1307 = vadd.f32 %v1306, %v1276
      %v1308 = vadd.f32 %v1307, %v1277
      %v1309 = vrot.slane %v1308, 4
      %v1310 = vadd.f32 %v1308, %v1309
      %v1311 = vrot.slane %v1310, 2
      %v1312 = vadd.f32 %v1310, %v1311
      %v1313 = vrot.slane %v1312, 1
      %v1314 = vadd.f32 %v1312, %v1313
      %vm1315 = vcmp.eq.s32.totalorder %v657, 0
      %vm1316 = vcmp.eq.s32.totalorder %v657, 1
      %v1317 = vsel %vm1316, %v1314, 0.0
      %v1318 = vsel %vm1315, %v1245, %v1317
      %1319 = vst [vmem:[%s212] sm:$0xff] %v1318
      %s1320 = smul.u32 32, %s17
      %p1321 = scmp.lt.s32.totalorder %s1320, 63
      %s1322 = scalar_select %p1321, %s1320, 63
      %s1323 = smul.addr %s1322, 8
      %s1324 = scalar_lea.vmem %s3, %s1323
      %p1325 = scmp.lt.s32.totalorder %s17, 1
      %s1326 = scalar_select %p1325, %s17, 1
      %s1327 = smul.addr %s1326, 8
      %s1328 = scalar_lea.vmem %s4, %s1327
      // Predicated region
      $region33: #{encoder_block_forward.2} parent=31 // pred_check
        %p1329 = pneg %p103
      $region34: #{encoder_block_forward.2} parent=31 // pred_check_branch
        %1331 = sbr.rel (%p1329) target = $region36
      $region35: #{encoder_block_forward.2} parent=31 // pred_region
        %s1332 = smul.u32 32, %s17
      $region36: #{encoder_block_forward.2} parent=31 // pred_fallthru
        _
      // Predicated region
      $region37: #{encoder_block_forward.2} parent=31 // pred_check
        %p1333 = pneg %p129
      $region38: #{encoder_block_forward.2} parent=31 // pred_check_branch
        %1335 = sbr.rel (%p1333) target = $region40
      $region39: #{encoder_block_forward.2} parent=31 // pred_region
        _
      $region40: #{encoder_block_forward.2} parent=31 // pred_fallthru
        _
    $region32: #{encoder_block_forward.2} parent=5 // pred_fallthru
      _
    %p1336 = scmp.le.s32.totalorder 2, %s12
    // Predicated region
    $region41: #{encoder_block_forward.2} parent=5 // pred_check
      %p1337 = pneg %p1336
    $region42: #{encoder_block_forward.2} parent=5 // pred_check_branch
      %1339 = sbr.rel (%p1337) target = $region44
    $region43: #{encoder_block_forward.2} parent=5 // pred_region
      %s1340 = ssub.s32 %s12, 2
      // Predicated region
      $region45: #{encoder_block_forward.2} parent=43 // pred_check
        %p1341 = pneg %p109
      $region46: #{encoder_block_forward.2} parent=43 // pred_check_branch
        %1343 = sbr.rel (%p1341) target = $region48
      $region47: #{encoder_block_forward.2} parent=43 // pred_region
        %s1344 = smul.u32 32, %s18
        %p1345 = scmp.lt.s32.totalorder %s1344, 63
        %s1346 = scalar_select %p1345, %s1344, 63
        %s1347 = smul.addr %s1346, 8
        %s1348 = scalar_lea.vmem %s3, %s1347
      $region48: #{encoder_block_forward.2} parent=43 // pred_fallthru
        _
      // Predicated region
      $region49: #{encoder_block_forward.2} parent=43 // pred_check
        %p1349 = pneg %p135
      $region50: #{encoder_block_forward.2} parent=43 // pred_check_branch
        %1351 = sbr.rel (%p1349) target = $region52
      $region51: #{encoder_block_forward.2} parent=43 // pred_region
        %p1352 = scmp.lt.s32.totalorder %s18, 1
        %s1353 = scalar_select %p1352, %s18, 1
        %s1354 = smul.addr %s1353, 8
        %s1355 = scalar_lea.vmem %s4, %s1354
      $region52: #{encoder_block_forward.2} parent=43 // pred_fallthru
        _
    $region44: #{encoder_block_forward.2} parent=5 // pred_fallthru
      _
  $region6: #{encoder_block_forward.2} parent=0 // loop_footer
    %s16 = sadd.s32 1, %s12
  $region7: #{encoder_block_forward.2} parent=0 // loop_footer_branch
    %11 = sbr.rel target = $region3
  $region8: #{encoder_block_forward.2} parent=0 // loop_exit
    _

</llo_original>
